<compile_context>
chip_gen: v7x
topology: tpu7x:2x2x1
jax: 0.10.0
libtpu: 0.0.40
codegen_flags: <defaults>
</compile_context>

<pallas_src>
import functools

import jax
import jax.numpy as jnp
from jax import lax
from jax.experimental import pallas as pl
from jax.experimental.pallas import tpu as pltpu


# ------------------------------ Pallas kernel --------------------------------

def _fused_conv_bn_relu_kernel(w_ref, x_ref, mask_ref, gamma_ref, beta_ref,
                               o_ref,
                               conv_ref, scale_ref, shift_ref, *,
                               kh, kw, dilation, oh, wp, n_imgs, n_valid, eps,
                               need_relu):
    """Two-phase fused kernel, grid = (2, N).

    phase 0, step n : conv for image n (implicit im2col, MXU, f32 accumulate)
                      -> VMEM-resident conv_ref[n]  of shape (OC, OH*Wp).
    phase 1, step 0 : two-pass batch stats over conv_ref -> scale / shift.
    phase 1, step n : out[n] = relu(conv_ref[n] * scale + shift).
    """
    phase = pl.program_id(0)
    n = pl.program_id(1)
    oc = w_ref.shape[1]
    mw = oh * wp                                     # "wide" M (incl. overhang cols)

    @pl.when(phase == 0)
    def _conv():
        # Implicit im2col: every tap (i, j) of the KH x KW stencil is a contiguous
        # lane slice of the flattened padded image -- no A matrix is ever built.
        # (MXU hygiene note: K per matmul is C; for production Inception channel
        # counts (64-384) this is a reasonable MXU fill; the toy shape is HBM-bound.)
        def tap(i, j):
            off = (i * wp + j) * dilation
            a = x_ref[0, :, off:off + mw]            # (C, Mw), static slice
            return jnp.dot(w_ref[i * kw + j], a,     # (OC, C) @ (C, Mw)
                           preferred_element_type=jnp.float32)

        y = tap(0, 0)
        for i in range(kh):
            for j in range(kw):
                if i or j:
                    y = y + tap(i, j)
        conv_ref[n] = y                              # f32, stays in VMEM across phases

    @pl.when((phase == 1) & (n == 0))
    def _stats():
        # Two-pass batch statistics straight from the VMEM-resident conv buffer:
        # no extra HBM pass and no E[y^2]-E[y]^2 cancellation.  `mask` zeroes the
        # Wp-OW overhang columns so they never pollute the statistics.
        count = float(n_imgs * n_valid)
        msk = mask_ref[...]                          # (1, Mw)

        def _acc_sum(i, acc):
            return acc + jnp.sum(conv_ref[i] * msk, axis=-1, keepdims=True)

        total = lax.fori_loop(0, n_imgs, _acc_sum,
                              jnp.zeros((oc, 1), jnp.float32))
        mean = total / count

        def _acc_ssq(i, acc):
            d = (conv_ref[i] - mean) * msk
            return acc + jnp.sum(d * d, axis=-1, keepdims=True)

        ssq = lax.fori_loop(0, n_imgs, _acc_ssq,
                            jnp.zeros((oc, 1), jnp.float32))
        var = ssq / count                            # biased variance (PyTorch BN fwd)
        inv_std = lax.rsqrt(var + eps)
        g = gamma_ref[...]
        scale_ref[...] = g * inv_std
        shift_ref[...] = beta_ref[...] - mean * g * inv_std

    @pl.when(phase == 1)
    def _normalize_and_write():
        out = conv_ref[n] * scale_ref[...] + shift_ref[...]
        if need_relu:
            out = jnp.maximum(out, 0.0)
        o_ref[0] = out                               # lane-dense (OC, Mw) store


# --------------------------------- Wrapper ------------------------------------

def basic_conv2d(x, conv_weight, gamma, beta, *, stride=1, padding=0,
                 dilation=1, need_relu=True, eps=1e-5,
                 matmul_dtype=jnp.bfloat16):
    """BasicConv2d forward.  x: (N, C, H, W) f32, conv_weight: (OC, C, KH, KW).

    matmul_dtype=bfloat16 uses bf16 MXU operands with f32 accumulation; pass
    jnp.float32 for strict f32 Conv2d numerics.
    """
    n_im, c_in, h, w = x.shape
    oc, c_w, kh, kw = conv_weight.shape
    assert c_w == c_in
    if stride != 1:
        # TODO(synk): stride > 1 needs strided lane slices (pl.ds stride) or a
        # materialized-A fallback; not implemented in the fused implicit-im2col path.
        raise NotImplementedError("fused implicit-im2col path supports stride=1")

    hp = h + 2 * padding
    wp = w + 2 * padding
    oh = hp - dilation * (kh - 1)
    ow = wp - dilation * (kw - 1)
    assert oh > 0 and ow > 0
    mw = oh * wp                                     # wide M: OW<=col<Wp are overhang

    # Extra zero rows at the bottom so the last tap's lane slice never overruns.
    extra_rows = -(-((kw - 1) * dilation) // wp)
    flat_len = (hp + extra_rows) * wp

    # The ONLY x-sized preprocessing pass (the 9x materialized im2col is gone):
    # zero-pad, cast to the matmul dtype and flatten spatially.
    xpad = jnp.pad(x, ((0, 0), (0, 0),
                       (padding, padding + extra_rows),
                       (padding, padding)))
    xflat = xpad.astype(matmul_dtype).reshape(n_im, c_in, flat_len)

    # Weight as (KH*KW, OC, C): tap r = i*KW + j  ->  w_taps[r] = W[:, :, i, j].
    w_taps = (conv_weight.transpose(2, 3, 0, 1)
              .reshape(kh * kw, oc, c_in).astype(matmul_dtype))

    gamma2 = gamma.reshape(oc, 1).astype(jnp.float32)
    beta2 = beta.reshape(oc, 1).astype(jnp.float32)

    # 1.0 on the OW valid columns of each padded row, 0.0 on the Wp-OW overhang.
    col = jnp.arange(mw, dtype=jnp.int32)
    mask = ((col % wp) < ow).astype(jnp.float32).reshape(1, mw)

    # ---- VMEM budget: derive from the actual footprint & device generation -----
    itm = jnp.dtype(matmul_dtype).itemsize
    footprint = (2 * (c_in * flat_len * itm)         # double-buffered x block
                 + 2 * (kh * kw * oc * c_in * itm)   # weight taps
                 + 2 * (oc * mw * 4)                 # output block
                 + n_im * oc * mw * 4                # VMEM-resident conv buffer
                 + 2 * (mw * 4) + 8 * oc * 4)        # mask + gamma/beta/scale/shift
    footprint = int(footprint * 1.5) + (1 << 20)     # (8,128) tile padding + slack
    vmem_cap = 64 << 20                              # v7x per-core VMEM (smallest)
    try:
        vmem_cap = int(pltpu.get_tpu_info().vmem_capacity_bytes)
    except Exception:
        pass
    if footprint > int(0.7 * vmem_cap):
        # TODO(synk): tiled two-pass fallback (conv+stats -> bf16 HBM intermediate
        # -> bn_relu) for shapes whose conv buffer does not fit in VMEM.
        raise NotImplementedError("conv buffer does not fit in VMEM")
    vmem_limit = min(int(0.9 * vmem_cap), max(footprint + (8 << 20), 32 << 20))

    kernel = functools.partial(
        _fused_conv_bn_relu_kernel,
        kh=kh, kw=kw, dilation=dilation, oh=oh, wp=wp,
        n_imgs=n_im, n_valid=oh * ow, eps=float(eps), need_relu=need_relu)

    out_wide = pl.pallas_call(
        kernel,
        out_shape=jax.ShapeDtypeStruct((n_im, oc, mw), jnp.float32),
        grid_spec=pltpu.PrefetchScalarGridSpec(
            num_scalar_prefetch=0,
            grid=(2, n_im),                          # (phase, image)
            in_specs=[
                pl.BlockSpec((kh * kw, oc, c_in), lambda p, n: (0, 0, 0)),
                # image n during phase 0; frozen on the last image during phase 1
                # (no re-fetch of x while normalizing).
                pl.BlockSpec((1, c_in, flat_len),
                             lambda p, n: ((1 - p) * n + p * (n_im - 1), 0, 0)),
                pl.BlockSpec((1, mw), lambda p, n: (0, 0)),
                pl.BlockSpec((oc, 1), lambda p, n: (0, 0)),
                pl.BlockSpec((oc, 1), lambda p, n: (0, 0)),
            ],
            # Output block index is pinned to 0 during phase 0 (never written there),
            # then walks the images during phase 1.
            out_specs=pl.BlockSpec((1, oc, mw), lambda p, n: (p * n, 0, 0)),
            scratch_shapes=[
                pltpu.VMEM((n_im, oc, mw), jnp.float32),   # conv buffer (whole batch)
                pltpu.VMEM((oc, 1), jnp.float32),          # scale
                pltpu.VMEM((oc, 1), jnp.float32),          # shift
            ]),
        compiler_params=pltpu.CompilerParams(
            # Both axes sequential: phase 1 needs all of phase 0's conv results.
            # TODO(synk): per-core partial stats would let the image axis be
            # "parallel" on v7x's 2 TensorCores.
            dimension_semantics=("arbitrary", "arbitrary"),
            vmem_limit_bytes=vmem_limit),
    )(w_taps, xflat, mask, gamma2, beta2)

    # Free reshape + narrow slice: drop the Wp-OW overhang columns.  The kernel
    # already wrote the output in (N, OC, OH, *) order -> no NCHW transpose pass.
    return out_wide.reshape(n_im, oc, oh, wp)[:, :, :, :ow]


# -------------------------------- Reference -----------------------------------

def basic_conv2d_ref(x, conv_weight, gamma, beta, *, stride=1, padding=0,
                     dilation=1, need_relu=True, eps=1e-5,
                     conv_dtype=jnp.float32):
    out = lax.conv_general_dilated(
        x.astype(conv_dtype), conv_weight.astype(conv_dtype),
        window_strides=(stride, stride),
        padding=[(padding, padding), (padding, padding)],
        rhs_dilation=(dilation, dilation),
        dimension_numbers=("NCHW", "OIHW", "NCHW"),
        preferred_element_type=jnp.float32)
    mean = out.mean(axis=(0, 2, 3), keepdims=True)
    var = out.var(axis=(0, 2, 3), keepdims=True)
    out = (out - mean) * lax.rsqrt(var + eps)
    out = out * gamma.reshape(1, -1, 1, 1) + beta.reshape(1, -1, 1, 1)
    if need_relu:
        out = jnp.maximum(out, 0.0)
    return out


# ----------------------------------- Main --------------------------------------

if __name__ == "__main__":
    # BasicConv2d(in_channels=4, out_channels=8, kernel_size=3, padding=1)
    N, C, H, W = 2, 4, 16, 16
    OC, KH, KW = 8, 3, 3
    stride, padding, dilation = 1, 1, 1

    key = jax.random.PRNGKey(0)
    kx, kw_, kg, kb = jax.random.split(key, 4)
    x = jax.random.normal(kx, (N, C, H, W), dtype=jnp.float32)
    conv_weight = jax.random.normal(kw_, (OC, C, KH, KW), dtype=jnp.float32) * 0.1
    gamma = jax.random.normal(kg, (OC,), dtype=jnp.float32) * 0.1 + 1.0
    beta = jax.random.normal(kb, (OC,), dtype=jnp.float32) * 0.1

    out = basic_conv2d(x, conv_weight, gamma, beta,
                       stride=stride, padding=padding, dilation=dilation,
                       need_relu=True)
    out = jax.block_until_ready(out)

    # Compare against a matmul-precision-matched reference (bf16 conv operands,
    # f32 accumulation).  Pass matmul_dtype=jnp.float32 to basic_conv2d for
    # strict f32 Conv2d numerics.
    ref = basic_conv2d_ref(x, conv_weight, gamma, beta,
                           stride=stride, padding=padding, dilation=dilation,
                           need_relu=True, conv_dtype=jnp.bfloat16)
    assert out.shape == (N, OC, H, W), out.shape
    max_err = float(jnp.max(jnp.abs(out - ref)))
    assert jnp.allclose(out, ref, atol=2e-3, rtol=2e-3), max_err
    print("KERNEL_OK")
</pallas_src>

<mosaic_0001>
module attributes {stable_mosaic.version = 11 : i64} {
  func.func @_fused_conv_bn_relu_kernel(%arg0: i32, %arg1: i32, %arg2: memref<9x8x4xbf16, #tpu.memory_space<vmem>>, %arg3: memref<1x4x342xbf16, #tpu.memory_space<vmem>>, %arg4: memref<1x288xf32, #tpu.memory_space<vmem>>, %arg5: memref<8x1xf32, #tpu.memory_space<vmem>>, %arg6: memref<8x1xf32, #tpu.memory_space<vmem>>, %arg7: memref<1x8x288xf32, #tpu.memory_space<vmem>>, %arg8: memref<2x8x288xf32, #tpu.memory_space<vmem>>, %arg9: memref<8x1xf32, #tpu.memory_space<vmem>>, %arg10: memref<8x1xf32, #tpu.memory_space<vmem>>) attributes {dimension_semantics = [#tpu.dimension_semantics<arbitrary>, #tpu.dimension_semantics<arbitrary>], iteration_bounds = array<i64: 2, 2>, scalar_prefetch = 0 : i64, scratch_operands = 3 : i64, tpu.core_type = #tpu.core_type<tc>, window_params = [{pipeline_mode = #tpu.pipeline_mode<synchronous>, transform_indices = @transform_0, window_bounds = array<i64: 9, 8, 4>}, {transform_indices = @transform_1, window_bounds = array<i64: 1, 4, 342>}, {pipeline_mode = #tpu.pipeline_mode<synchronous>, transform_indices = @transform_2, window_bounds = array<i64: 1, 288>}, {pipeline_mode = #tpu.pipeline_mode<synchronous>, transform_indices = @transform_3, window_bounds = array<i64: 8, 1>}, {pipeline_mode = #tpu.pipeline_mode<synchronous>, transform_indices = @transform_4, window_bounds = array<i64: 8, 1>}, {transform_indices = @transform_5, window_bounds = array<i64: 1, 8, 288>}]} {
    %c0_i32 = arith.constant 0 : i32
    %0 = arith.cmpi eq, %arg0, %c0_i32 : i32
    %1 = arith.extui %0 : i1 to i32
    %c0_i32_0 = arith.constant 0 : i32
    %2 = arith.cmpi ne, %1, %c0_i32_0 : i32
    scf.if %2 {
      %c0 = arith.constant 0 : index
      %c0_5 = arith.constant 0 : index
      %c0_6 = arith.constant 0 : index
      %11 = vector.load %arg3[%c0, %c0_5, %c0_6] : memref<1x4x342xbf16, #tpu.memory_space<vmem>>, vector<1x4x288xbf16>
      %12 = vector.shape_cast %11 : vector<1x4x288xbf16> to vector<4x288xbf16>
      %c0_7 = arith.constant 0 : index
      %c0_8 = arith.constant 0 : index
      %c0_9 = arith.constant 0 : index
      %13 = vector.load %arg2[%c0_7, %c0_8, %c0_9] : memref<9x8x4xbf16, #tpu.memory_space<vmem>>, vector<1x8x4xbf16>
      %14 = vector.shape_cast %13 : vector<1x8x4xbf16> to vector<8x4xbf16>
      %cst = arith.constant dense<0.000000e+00> : vector<8x288xf32>
      %15 = tpu.matmul %14, %12, %cst {dimension_numbers = #tpu.dot_dimension_numbers<[1], [0], [0], [1], [0, 0, 1, 1], [], []>} : vector<8x4xbf16>, vector<4x288xbf16>, vector<8x288xf32> -> vector<8x288xf32>
      %c0_10 = arith.constant 0 : index
      %c0_11 = arith.constant 0 : index
      %c1 = arith.constant 1 : index
      %16 = vector.load %arg3[%c0_10, %c0_11, %c1] : memref<1x4x342xbf16, #tpu.memory_space<vmem>>, vector<1x4x288xbf16>
      %17 = vector.shape_cast %16 : vector<1x4x288xbf16> to vector<4x288xbf16>
      %c1_12 = arith.constant 1 : index
      %c0_13 = arith.constant 0 : index
      %c0_14 = arith.constant 0 : index
      %18 = vector.load %arg2[%c1_12, %c0_13, %c0_14] : memref<9x8x4xbf16, #tpu.memory_space<vmem>>, vector<1x8x4xbf16>
      %19 = vector.shape_cast %18 : vector<1x8x4xbf16> to vector<8x4xbf16>
      %cst_15 = arith.constant dense<0.000000e+00> : vector<8x288xf32>
      %20 = tpu.matmul %19, %17, %cst_15 {dimension_numbers = #tpu.dot_dimension_numbers<[1], [0], [0], [1], [0, 0, 1, 1], [], []>} : vector<8x4xbf16>, vector<4x288xbf16>, vector<8x288xf32> -> vector<8x288xf32>
      %21 = arith.addf %15, %20 : vector<8x288xf32>
      %c0_16 = arith.constant 0 : index
      %c0_17 = arith.constant 0 : index
      %c2 = arith.constant 2 : index
      %22 = vector.load %arg3[%c0_16, %c0_17, %c2] : memref<1x4x342xbf16, #tpu.memory_space<vmem>>, vector<1x4x288xbf16>
      %23 = vector.shape_cast %22 : vector<1x4x288xbf16> to vector<4x288xbf16>
      %c2_18 = arith.constant 2 : index
      %c0_19 = arith.constant 0 : index
      %c0_20 = arith.constant 0 : index
      %24 = vector.load %arg2[%c2_18, %c0_19, %c0_20] : memref<9x8x4xbf16, #tpu.memory_space<vmem>>, vector<1x8x4xbf16>
      %25 = vector.shape_cast %24 : vector<1x8x4xbf16> to vector<8x4xbf16>
      %cst_21 = arith.constant dense<0.000000e+00> : vector<8x288xf32>
      %26 = tpu.matmul %25, %23, %cst_21 {dimension_numbers = #tpu.dot_dimension_numbers<[1], [0], [0], [1], [0, 0, 1, 1], [], []>} : vector<8x4xbf16>, vector<4x288xbf16>, vector<8x288xf32> -> vector<8x288xf32>
      %27 = arith.addf %21, %26 : vector<8x288xf32>
      %c0_22 = arith.constant 0 : index
      %c0_23 = arith.constant 0 : index
      %c18 = arith.constant 18 : index
      %28 = vector.load %arg3[%c0_22, %c0_23, %c18] : memref<1x4x342xbf16, #tpu.memory_space<vmem>>, vector<1x4x288xbf16>
      %29 = vector.shape_cast %28 : vector<1x4x288xbf16> to vector<4x288xbf16>
      %c3 = arith.constant 3 : index
      %c0_24 = arith.constant 0 : index
      %c0_25 = arith.constant 0 : index
      %30 = vector.load %arg2[%c3, %c0_24, %c0_25] : memref<9x8x4xbf16, #tpu.memory_space<vmem>>, vector<1x8x4xbf16>
      %31 = vector.shape_cast %30 : vector<1x8x4xbf16> to vector<8x4xbf16>
      %cst_26 = arith.constant dense<0.000000e+00> : vector<8x288xf32>
      %32 = tpu.matmul %31, %29, %cst_26 {dimension_numbers = #tpu.dot_dimension_numbers<[1], [0], [0], [1], [0, 0, 1, 1], [], []>} : vector<8x4xbf16>, vector<4x288xbf16>, vector<8x288xf32> -> vector<8x288xf32>
      %33 = arith.addf %27, %32 : vector<8x288xf32>
      %c0_27 = arith.constant 0 : index
      %c0_28 = arith.constant 0 : index
      %c19 = arith.constant 19 : index
      %34 = vector.load %arg3[%c0_27, %c0_28, %c19] : memref<1x4x342xbf16, #tpu.memory_space<vmem>>, vector<1x4x288xbf16>
      %35 = vector.shape_cast %34 : vector<1x4x288xbf16> to vector<4x288xbf16>
      %c4 = arith.constant 4 : index
      %c0_29 = arith.constant 0 : index
      %c0_30 = arith.constant 0 : index
      %36 = vector.load %arg2[%c4, %c0_29, %c0_30] : memref<9x8x4xbf16, #tpu.memory_space<vmem>>, vector<1x8x4xbf16>
      %37 = vector.shape_cast %36 : vector<1x8x4xbf16> to vector<8x4xbf16>
      %cst_31 = arith.constant dense<0.000000e+00> : vector<8x288xf32>
      %38 = tpu.matmul %37, %35, %cst_31 {dimension_numbers = #tpu.dot_dimension_numbers<[1], [0], [0], [1], [0, 0, 1, 1], [], []>} : vector<8x4xbf16>, vector<4x288xbf16>, vector<8x288xf32> -> vector<8x288xf32>
      %39 = arith.addf %33, %38 : vector<8x288xf32>
      %c0_32 = arith.constant 0 : index
      %c0_33 = arith.constant 0 : index
      %c20 = arith.constant 20 : index
      %40 = vector.load %arg3[%c0_32, %c0_33, %c20] : memref<1x4x342xbf16, #tpu.memory_space<vmem>>, vector<1x4x288xbf16>
      %41 = vector.shape_cast %40 : vector<1x4x288xbf16> to vector<4x288xbf16>
      %c5 = arith.constant 5 : index
      %c0_34 = arith.constant 0 : index
      %c0_35 = arith.constant 0 : index
      %42 = vector.load %arg2[%c5, %c0_34, %c0_35] : memref<9x8x4xbf16, #tpu.memory_space<vmem>>, vector<1x8x4xbf16>
      %43 = vector.shape_cast %42 : vector<1x8x4xbf16> to vector<8x4xbf16>
      %cst_36 = arith.constant dense<0.000000e+00> : vector<8x288xf32>
      %44 = tpu.matmul %43, %41, %cst_36 {dimension_numbers = #tpu.dot_dimension_numbers<[1], [0], [0], [1], [0, 0, 1, 1], [], []>} : vector<8x4xbf16>, vector<4x288xbf16>, vector<8x288xf32> -> vector<8x288xf32>
      %45 = arith.addf %39, %44 : vector<8x288xf32>
      %c0_37 = arith.constant 0 : index
      %c0_38 = arith.constant 0 : index
      %c36 = arith.constant 36 : index
      %46 = vector.load %arg3[%c0_37, %c0_38, %c36] : memref<1x4x342xbf16, #tpu.memory_space<vmem>>, vector<1x4x288xbf16>
      %47 = vector.shape_cast %46 : vector<1x4x288xbf16> to vector<4x288xbf16>
      %c6 = arith.constant 6 : index
      %c0_39 = arith.constant 0 : index
      %c0_40 = arith.constant 0 : index
      %48 = vector.load %arg2[%c6, %c0_39, %c0_40] : memref<9x8x4xbf16, #tpu.memory_space<vmem>>, vector<1x8x4xbf16>
      %49 = vector.shape_cast %48 : vector<1x8x4xbf16> to vector<8x4xbf16>
      %cst_41 = arith.constant dense<0.000000e+00> : vector<8x288xf32>
      %50 = tpu.matmul %49, %47, %cst_41 {dimension_numbers = #tpu.dot_dimension_numbers<[1], [0], [0], [1], [0, 0, 1, 1], [], []>} : vector<8x4xbf16>, vector<4x288xbf16>, vector<8x288xf32> -> vector<8x288xf32>
      %51 = arith.addf %45, %50 : vector<8x288xf32>
      %c0_42 = arith.constant 0 : index
      %c0_43 = arith.constant 0 : index
      %c37 = arith.constant 37 : index
      %52 = vector.load %arg3[%c0_42, %c0_43, %c37] : memref<1x4x342xbf16, #tpu.memory_space<vmem>>, vector<1x4x288xbf16>
      %53 = vector.shape_cast %52 : vector<1x4x288xbf16> to vector<4x288xbf16>
      %c7 = arith.constant 7 : index
      %c0_44 = arith.constant 0 : index
      %c0_45 = arith.constant 0 : index
      %54 = vector.load %arg2[%c7, %c0_44, %c0_45] : memref<9x8x4xbf16, #tpu.memory_space<vmem>>, vector<1x8x4xbf16>
      %55 = vector.shape_cast %54 : vector<1x8x4xbf16> to vector<8x4xbf16>
      %cst_46 = arith.constant dense<0.000000e+00> : vector<8x288xf32>
      %56 = tpu.matmul %55, %53, %cst_46 {dimension_numbers = #tpu.dot_dimension_numbers<[1], [0], [0], [1], [0, 0, 1, 1], [], []>} : vector<8x4xbf16>, vector<4x288xbf16>, vector<8x288xf32> -> vector<8x288xf32>
      %57 = arith.addf %51, %56 : vector<8x288xf32>
      %c0_47 = arith.constant 0 : index
      %c0_48 = arith.constant 0 : index
      %c38 = arith.constant 38 : index
      %58 = vector.load %arg3[%c0_47, %c0_48, %c38] : memref<1x4x342xbf16, #tpu.memory_space<vmem>>, vector<1x4x288xbf16>
      %59 = vector.shape_cast %58 : vector<1x4x288xbf16> to vector<4x288xbf16>
      %c8 = arith.constant 8 : index
      %c0_49 = arith.constant 0 : index
      %c0_50 = arith.constant 0 : index
      %60 = vector.load %arg2[%c8, %c0_49, %c0_50] : memref<9x8x4xbf16, #tpu.memory_space<vmem>>, vector<1x8x4xbf16>
      %61 = vector.shape_cast %60 : vector<1x8x4xbf16> to vector<8x4xbf16>
      %cst_51 = arith.constant dense<0.000000e+00> : vector<8x288xf32>
      %62 = tpu.matmul %61, %59, %cst_51 {dimension_numbers = #tpu.dot_dimension_numbers<[1], [0], [0], [1], [0, 0, 1, 1], [], []>} : vector<8x4xbf16>, vector<4x288xbf16>, vector<8x288xf32> -> vector<8x288xf32>
      %63 = arith.addf %57, %62 : vector<8x288xf32>
      %64 = arith.index_cast %arg1 : i32 to index
      %c0_52 = arith.constant 0 : index
      %c0_53 = arith.constant 0 : index
      %65 = vector.load %arg8[%64, %c0_52, %c0_53] : memref<2x8x288xf32, #tpu.memory_space<vmem>>, vector<1x8x288xf32>
      %66 = vector.shape_cast %65 : vector<1x8x288xf32> to vector<8x288xf32>
      %67 = vector.shape_cast %63 : vector<8x288xf32> to vector<1x8x288xf32>
      tpu.vector_store %arg8[%64, %c0_52, %c0_53], %67 {strides = array<i32>} : memref<2x8x288xf32, #tpu.memory_space<vmem>>, vector<1x8x288xf32>,
    } else {
    }
    %c1_i32 = arith.constant 1 : i32
    %3 = arith.cmpi eq, %arg0, %c1_i32 : i32
    %c0_i32_1 = arith.constant 0 : i32
    %4 = arith.cmpi eq, %arg1, %c0_i32_1 : i32
    %5 = arith.andi %3, %4 : i1
    %6 = arith.extui %5 : i1 to i32
    %c0_i32_2 = arith.constant 0 : i32
    %7 = arith.cmpi ne, %6, %c0_i32_2 : i32
    scf.if %7 {
      %c0 = arith.constant 0 : index
      %c0_5 = arith.constant 0 : index
      %11 = vector.load %arg4[%c0, %c0_5] : memref<1x288xf32, #tpu.memory_space<vmem>>, vector<1x288xf32>
      %cst = arith.constant 0.000000e+00 : f32
      %12 = vector.broadcast %cst : f32 to vector<8x1xf32>
      %c0_i32_6 = arith.constant 0 : i32
      %c2_i32 = arith.constant 2 : i32
      %13 = arith.addi %c0_i32_6, %c2_i32 : i32
      %c1_i32_7 = arith.constant 1 : i32
      %14 = scf.for %arg11 = %c0_i32_6 to %13 step %c1_i32_7 iter_args(%arg12 = %12) -> (vector<8x1xf32>)  : i32 {
        %33 = arith.index_cast %arg11 : i32 to index
        %c0_25 = arith.constant 0 : index
        %c0_26 = arith.constant 0 : index
        %34 = vector.load %arg8[%33, %c0_25, %c0_26] : memref<2x8x288xf32, #tpu.memory_space<vmem>>, vector<1x8x288xf32>
        %35 = vector.shape_cast %34 : vector<1x8x288xf32> to vector<8x288xf32>
        %36 = vector.broadcast %11 : vector<1x288xf32> to vector<8x288xf32>
        %37 = arith.mulf %35, %36 : vector<8x288xf32>
        %cst_27 = arith.constant dense<0.000000e+00> : vector<8xf32>
        %38 = vector.multi_reduction <add>, %37, %cst_27 [1] : vector<8x288xf32> to vector<8xf32>
        %39 = vector.shape_cast %38 : vector<8xf32> to vector<8x1xf32>
        %40 = arith.addf %arg12, %39 : vector<8x1xf32>
        scf.yield %40 : vector<8x1xf32>
      }
      %c2_i32_8 = arith.constant 2 : i32
      %cst_9 = arith.constant 5.120000e+02 : f32
      %15 = vector.broadcast %cst_9 : f32 to vector<8x1xf32>
      %16 = arith.divf %14, %15 : vector<8x1xf32>
      %cst_10 = arith.constant 0.000000e+00 : f32
      %17 = vector.broadcast %cst_10 : f32 to vector<8x1xf32>
      %c0_i32_11 = arith.constant 0 : i32
      %c2_i32_12 = arith.constant 2 : i32
      %18 = arith.addi %c0_i32_11, %c2_i32_12 : i32
      %c1_i32_13 = arith.constant 1 : i32
      %19 = scf.for %arg11 = %c0_i32_11 to %18 step %c1_i32_13 iter_args(%arg12 = %17) -> (vector<8x1xf32>)  : i32 {
        %33 = arith.index_cast %arg11 : i32 to index
        %c0_25 = arith.constant 0 : index
        %c0_26 = arith.constant 0 : index
        %34 = vector.load %arg8[%33, %c0_25, %c0_26] : memref<2x8x288xf32, #tpu.memory_space<vmem>>, vector<1x8x288xf32>
        %35 = vector.shape_cast %34 : vector<1x8x288xf32> to vector<8x288xf32>
        %36 = vector.broadcast %16 : vector<8x1xf32> to vector<8x288xf32>
        %37 = arith.subf %35, %36 : vector<8x288xf32>
        %38 = vector.broadcast %11 : vector<1x288xf32> to vector<8x288xf32>
        %39 = arith.mulf %37, %38 : vector<8x288xf32>
        %40 = arith.mulf %39, %39 : vector<8x288xf32>
        %cst_27 = arith.constant dense<0.000000e+00> : vector<8xf32>
        %41 = vector.multi_reduction <add>, %40, %cst_27 [1] : vector<8x288xf32> to vector<8xf32>
        %42 = vector.shape_cast %41 : vector<8xf32> to vector<8x1xf32>
        %43 = arith.addf %arg12, %42 : vector<8x1xf32>
        scf.yield %43 : vector<8x1xf32>
      }
      %c2_i32_14 = arith.constant 2 : i32
      %cst_15 = arith.constant 5.120000e+02 : f32
      %20 = vector.broadcast %cst_15 : f32 to vector<8x1xf32>
      %21 = arith.divf %19, %20 : vector<8x1xf32>
      %cst_16 = arith.constant 9.99999974E-6 : f32
      %22 = vector.broadcast %cst_16 : f32 to vector<8x1xf32>
      %23 = arith.addf %21, %22 : vector<8x1xf32>
      %24 = math.rsqrt %23 : vector<8x1xf32>
      %c0_17 = arith.constant 0 : index
      %c0_18 = arith.constant 0 : index
      %25 = vector.load %arg5[%c0_17, %c0_18] : memref<8x1xf32, #tpu.memory_space<vmem>>, vector<8x1xf32>
      %26 = arith.mulf %25, %24 : vector<8x1xf32>
      %c0_19 = arith.constant 0 : index
      %c0_20 = arith.constant 0 : index
      %27 = vector.load %arg9[%c0_19, %c0_20] : memref<8x1xf32, #tpu.memory_space<vmem>>, vector<8x1xf32>
      tpu.vector_store %arg9[%c0_19, %c0_20], %26 {strides = array<i32>} : memref<8x1xf32, #tpu.memory_space<vmem>>, vector<8x1xf32>,
      %c0_21 = arith.constant 0 : index
      %c0_22 = arith.constant 0 : index
      %28 = vector.load %arg6[%c0_21, %c0_22] : memref<8x1xf32, #tpu.memory_space<vmem>>, vector<8x1xf32>
      %29 = arith.mulf %16, %25 : vector<8x1xf32>
      %30 = arith.mulf %29, %24 : vector<8x1xf32>
      %31 = arith.subf %28, %30 : vector<8x1xf32>
      %c0_23 = arith.constant 0 : index
      %c0_24 = arith.constant 0 : index
      %32 = vector.load %arg10[%c0_23, %c0_24] : memref<8x1xf32, #tpu.memory_space<vmem>>, vector<8x1xf32>
      tpu.vector_store %arg10[%c0_23, %c0_24], %31 {strides = array<i32>} : memref<8x1xf32, #tpu.memory_space<vmem>>, vector<8x1xf32>,
    } else {
    }
    %c1_i32_3 = arith.constant 1 : i32
    %8 = arith.cmpi eq, %arg0, %c1_i32_3 : i32
    %9 = arith.extui %8 : i1 to i32
    %c0_i32_4 = arith.constant 0 : i32
    %10 = arith.cmpi ne, %9, %c0_i32_4 : i32
    scf.if %10 {
      %11 = arith.index_cast %arg1 : i32 to index
      %c0 = arith.constant 0 : index
      %c0_5 = arith.constant 0 : index
      %12 = vector.load %arg8[%11, %c0, %c0_5] : memref<2x8x288xf32, #tpu.memory_space<vmem>>, vector<1x8x288xf32>
      %13 = vector.shape_cast %12 : vector<1x8x288xf32> to vector<8x288xf32>
      %c0_6 = arith.constant 0 : index
      %c0_7 = arith.constant 0 : index
      %14 = vector.load %arg9[%c0_6, %c0_7] : memref<8x1xf32, #tpu.memory_space<vmem>>, vector<8x1xf32>
      %15 = vector.broadcast %14 : vector<8x1xf32> to vector<8x288xf32>
      %16 = arith.mulf %13, %15 : vector<8x288xf32>
      %c0_8 = arith.constant 0 : index
      %c0_9 = arith.constant 0 : index
      %17 = vector.load %arg10[%c0_8, %c0_9] : memref<8x1xf32, #tpu.memory_space<vmem>>, vector<8x1xf32>
      %18 = vector.broadcast %17 : vector<8x1xf32> to vector<8x288xf32>
      %19 = arith.addf %16, %18 : vector<8x288xf32>
      %cst = arith.constant 0.000000e+00 : f32
      %20 = vector.broadcast %cst : f32 to vector<8x288xf32>
      %21 = arith.maximumf %19, %20 : vector<8x288xf32>
      %c0_10 = arith.constant 0 : index
      %c0_11 = arith.constant 0 : index
      %c0_12 = arith.constant 0 : index
      %22 = vector.load %arg7[%c0_10, %c0_11, %c0_12] : memref<1x8x288xf32, #tpu.memory_space<vmem>>, vector<1x8x288xf32>
      %23 = vector.shape_cast %22 : vector<1x8x288xf32> to vector<8x288xf32>
      %24 = vector.shape_cast %21 : vector<8x288xf32> to vector<1x8x288xf32>
      tpu.vector_store %arg7[%c0_10, %c0_11, %c0_12], %24 {strides = array<i32>} : memref<1x8x288xf32, #tpu.memory_space<vmem>>, vector<1x8x288xf32>,
    } else {
    }
    return
  }
  func.func @transform_0(%arg0: i32, %arg1: i32) -> (i32, i32, i32) {
    %c0_i32 = arith.constant 0 : i32
    %c0_i32_0 = arith.constant 0 : i32
    %c0_i32_1 = arith.constant 0 : i32
    %c0_i32_2 = arith.constant 0 : i32
    return %c0_i32, %c0_i32_0, %c0_i32_1 : i32, i32, i32
  }
  func.func @transform_1(%arg0: i32, %arg1: i32) -> (i32, i32, i32) {
    %c1_i32 = arith.constant 1 : i32
    %0 = arith.subi %c1_i32, %arg0 : i32
    %1 = arith.muli %0, %arg1 : i32
    %c1_i32_0 = arith.constant 1 : i32
    %2 = arith.muli %arg0, %c1_i32_0 : i32
    %3 = arith.addi %1, %2 : i32
    %c0_i32 = arith.constant 0 : i32
    %c0_i32_1 = arith.constant 0 : i32
    %c0_i32_2 = arith.constant 0 : i32
    return %3, %c0_i32, %c0_i32_1 : i32, i32, i32
  }
  func.func @transform_2(%arg0: i32, %arg1: i32) -> (i32, i32) {
    %c0_i32 = arith.constant 0 : i32
    %c0_i32_0 = arith.constant 0 : i32
    %c0_i32_1 = arith.constant 0 : i32
    return %c0_i32, %c0_i32_0 : i32, i32
  }
  func.func @transform_3(%arg0: i32, %arg1: i32) -> (i32, i32) {
    %c0_i32 = arith.constant 0 : i32
    %c0_i32_0 = arith.constant 0 : i32
    %c0_i32_1 = arith.constant 0 : i32
    return %c0_i32, %c0_i32_0 : i32, i32
  }
  func.func @transform_4(%arg0: i32, %arg1: i32) -> (i32, i32) {
    %c0_i32 = arith.constant 0 : i32
    %c0_i32_0 = arith.constant 0 : i32
    %c0_i32_1 = arith.constant 0 : i32
    return %c0_i32, %c0_i32_0 : i32, i32
  }
  func.func @transform_5(%arg0: i32, %arg1: i32) -> (i32, i32, i32) {
    %0 = arith.muli %arg0, %arg1 : i32
    %c0_i32 = arith.constant 0 : i32
    %c0_i32_0 = arith.constant 0 : i32
    %c0_i32_1 = arith.constant 0 : i32
    return %0, %c0_i32, %c0_i32_0 : i32, i32, i32
  }
}

</mosaic_0001>

<llo_original>
// kernel: tpu_custom_call.1
$region0: #{tpu_custom_call.1}
  #allocation0 [shape = 'u32[]', space=smem, size = 0x4, offset = 0x4, fixed_abs, tag = 'smem constant byte address 0x4 - core index']
  #allocation1 [shape = 'u32[144,128]{1,0:T(1,128)}', space=vmem, size = 0x12000, scoped, tag = 'internal scratch']
  #allocation2 [shape = 'f32[2,8,288]{2,1,0:T(8,128)}', space=vmem, size = 0x6000, scoped, tag = 'scratch operand']
  #allocation3 [shape = 'f32[8,1]{1,0:T(8,128)}', space=vmem, size = 0x1000, scoped, tag = 'scratch operand']
  #allocation4 [shape = 'f32[8,1]{1,0:T(8,128)}', space=vmem, size = 0x1000, scoped, tag = 'scratch operand']
  %s0 = inlined_call_operand.vmem [shape: bf16[9,8,4], index: 0, kind: input, shape index: {}]
  %s1 = inlined_call_operand.vmem [shape: bf16[2,4,342], index: 1, kind: input, shape index: {}]
  %s2 = inlined_call_operand.vmem [shape: f32[1,288], index: 2, kind: input, shape index: {}]
  %s3 = inlined_call_operand.vmem [shape: f32[8,1], index: 3, kind: input, shape index: {}]
  %s4 = inlined_call_operand.vmem [shape: f32[8,1], index: 4, kind: input, shape index: {}]
  %s5 = inlined_call_operand.hbm [shape: f32[2,8,288], index: 5, kind: output, shape index: {}]
  %s6 = sld [smem:[#allocation0]]
  $region79: #{tpu_custom_call.1} parent=0
    _
  %s8 = ssub.s32 1, %s6
  %s9 = scalar_select 0, %s8, %s6
  $region1: #{tpu_custom_call.1} parent=0
    #allocation5 [shape = 'u8[24576]{0}', space=vmem, size = 0x6000, scoped, tag = 'output window, operand 0']
    #allocation6 [shape = 's32[2]{0}', space=sflag, size = 0x8, scoped, tag = 'scoped memory for tpu_custom_call.1']
    %10 = vsyncpa [#allocation6], 0
    %s11 = scalar_lea.sflag [#allocation6], 1
    %12 = vsyncpa %s11, 0
    loop: start=0, step=1, limit=6
    $region2: #{tpu_custom_call.1} parent=1 // loop_pre_header
      _
    $region3: #{tpu_custom_call.1} parent=1 // loop_header
      %s14 = sphi 0, %s18
      %p15 = scmp.ge.s32.totalorder %s14, 6
      %s21 = sphi 0, %s33
      %s22 = sphi 0, %s29
      %s23 = sphi 0, %s21
      %s24 = sphi 0, %s22
      %s25 = sphi 0, %s23
      %s26 = sphi 0, %s24
      %s34 = sphi 0, %s34
      %s36 = sphi 0, %s34
      %s37 = sphi 0, %s36
      %s51 = sphi 0, %s37
      %s63 = sphi 0, %s65
      %s66 = sphi 0, %s63
      %s67 = sphi 0, %s66
      %s83 = sphi 0, %s67
      %s87 = sphi 0, %s87
      %s89 = sphi 0, %s87
      %s90 = sphi 0, %s89
      %s104 = sphi 0, %s90
      %s108 = sphi 0, %s108
      %s110 = sphi 0, %s108
      %s111 = sphi 0, %s110
      %s125 = sphi 0, %s111
      %s129 = sphi 0, %s129
      %s131 = sphi 0, %s129
      %s132 = sphi 0, %s131
      %s146 = sphi 0, %s132
      %s154 = sphi 0, %s156
      %s157 = sphi 0, %s154
      %s158 = sphi 0, %s157
      %s174 = sphi 0, %s158
    $region4: #{tpu_custom_call.1} parent=1 // loop_header_branch
      %17 = sbr.rel (%p15) target = $region8
    $region5: #{tpu_custom_call.1} parent=1 // loop_body
      %s19 = ssub.s32 %s14, 1
      %s20 = ssub.s32 %s14, 2
      %s27 = sadd.s32 1, %s22
      %p28 = scmp.ge.s32.totalorder %s27, 2
      %s29 = scalar_select %p28, 0, %s27
      %s30 = sadd.s32 1, %s21
      %s31 = scalar_select %p28, %s30, %s21
      %p32 = scmp.ge.s32.totalorder %s31, 2
      %s33 = scalar_select %p32, 0, %s31
      %s35 = sadd.s32 %s34, 1
      %p38 = scmp.eq.s32.totalorder %s14, 3
      %p39 = scmp.ne.s32.totalorder %s34, %s36
      %p40 = scmp.eq.s32.totalorder %s14, 0
      %p41 = por %p39, %p40
      %p42 = scmp.ne.s32.totalorder %s34, %s36
      %p43 = scmp.eq.s32.totalorder %s19, 3
      %p44 = por %p42, %p43
      %p45 = scmp.ne.s32.totalorder %s36, %s37
      %p46 = scmp.eq.s32.totalorder %s19, 0
      %p47 = por %p45, %p46
      %p48 = scmp.ne.s32.totalorder %s36, %s37
      %p49 = scmp.eq.s32.totalorder %s20, 3
      %p50 = por %p48, %p49
      %p52 = scmp.ne.s32.totalorder %s37, %s51
      %p53 = scmp.eq.s32.totalorder %s20, 0
      %p54 = por %p52, %p53
      %s55 = ssub.s32 1, %s21
      %s56 = smul.u32 %s55, %s22
      %s57 = sadd.s32 %s56, %s21
      %s58 = ssub.s32 1, %s33
      %s59 = smul.u32 %s58, %s29
      %s60 = sadd.s32 %s59, %s33
      %s61 = ssub.s32 %s57, %s60
      %p62 = scmp.eq.s32.totalorder %s61, 0
      %s64 = sadd.s32 %s63, 1
      %s65 = scalar_select %p62, %s63, %s64
      %p68 = pneg %p62
      %p69 = scmp.eq.s32.totalorder %s14, 3
      %p70 = por %p68, %p69
      %p71 = scmp.ne.s32.totalorder %s63, %s66
      %p72 = scmp.eq.s32.totalorder %s14, 0
      %p73 = por %p71, %p72
      %p74 = scmp.ne.s32.totalorder %s63, %s66
      %p75 = scmp.eq.s32.totalorder %s19, 3
      %p76 = por %p74, %p75
      %p77 = scmp.ne.s32.totalorder %s66, %s67
      %p78 = scmp.eq.s32.totalorder %s19, 0
      %p79 = por %p77, %p78
      %p80 = scmp.ne.s32.totalorder %s66, %s67
      %p81 = scmp.eq.s32.totalorder %s20, 3
      %p82 = por %p80, %p81
      %p84 = scmp.ne.s32.totalorder %s67, %s83
      %p85 = scmp.eq.s32.totalorder %s20, 0
      %p86 = por %p84, %p85
      %s88 = sadd.s32 %s87, 1
      %p91 = scmp.eq.s32.totalorder %s14, 3
      %p92 = scmp.ne.s32.totalorder %s87, %s89
      %p93 = scmp.eq.s32.totalorder %s14, 0
      %p94 = por %p92, %p93
      %p95 = scmp.ne.s32.totalorder %s87, %s89
      %p96 = scmp.eq.s32.totalorder %s19, 3
      %p97 = por %p95, %p96
      %p98 = scmp.ne.s32.totalorder %s89, %s90
      %p99 = scmp.eq.s32.totalorder %s19, 0
      %p100 = por %p98, %p99
      %p101 = scmp.ne.s32.totalorder %s89, %s90
      %p102 = scmp.eq.s32.totalorder %s20, 3
      %p103 = por %p101, %p102
      %p105 = scmp.ne.s32.totalorder %s90, %s104
      %p106 = scmp.eq.s32.totalorder %s20, 0
      %p107 = por %p105, %p106
      %s109 = sadd.s32 %s108, 1
      %p112 = scmp.eq.s32.totalorder %s14, 3
      %p113 = scmp.ne.s32.totalorder %s108, %s110
      %p114 = scmp.eq.s32.totalorder %s14, 0
      %p115 = por %p113, %p114
      %p116 = scmp.ne.s32.totalorder %s108, %s110
      %p117 = scmp.eq.s32.totalorder %s19, 3
      %p118 = por %p116, %p117
      %p119 = scmp.ne.s32.totalorder %s110, %s111
      %p120 = scmp.eq.s32.totalorder %s19, 0
      %p121 = por %p119, %p120
      %p122 = scmp.ne.s32.totalorder %s110, %s111
      %p123 = scmp.eq.s32.totalorder %s20, 3
      %p124 = por %p122, %p123
      %p126 = scmp.ne.s32.totalorder %s111, %s125
      %p127 = scmp.eq.s32.totalorder %s20, 0
      %p128 = por %p126, %p127
      %s130 = sadd.s32 %s129, 1
      %p133 = scmp.eq.s32.totalorder %s14, 3
      %p134 = scmp.ne.s32.totalorder %s129, %s131
      %p135 = scmp.eq.s32.totalorder %s14, 0
      %p136 = por %p134, %p135
      %p137 = scmp.ne.s32.totalorder %s129, %s131
      %p138 = scmp.eq.s32.totalorder %s19, 3
      %p139 = por %p137, %p138
      %p140 = scmp.ne.s32.totalorder %s131, %s132
      %p141 = scmp.eq.s32.totalorder %s19, 0
      %p142 = por %p140, %p141
      %p143 = scmp.ne.s32.totalorder %s131, %s132
      %p144 = scmp.eq.s32.totalorder %s20, 3
      %p145 = por %p143, %p144
      %p147 = scmp.ne.s32.totalorder %s132, %s146
      %p148 = scmp.eq.s32.totalorder %s20, 0
      %p149 = por %p147, %p148
      %s150 = smul.u32 %s21, %s22
      %s151 = smul.u32 %s33, %s29
      %s152 = ssub.s32 %s150, %s151
      %p153 = scmp.eq.s32.totalorder %s152, 0
      %s155 = sadd.s32 %s154, 1
      %s156 = scalar_select %p153, %s154, %s155
      %p159 = pneg %p153
      %p160 = scmp.eq.s32.totalorder %s14, 3
      %p161 = por %p159, %p160
      %p162 = scmp.ne.s32.totalorder %s154, %s157
      %p163 = scmp.eq.s32.totalorder %s14, 0
      %p164 = por %p162, %p163
      %p165 = scmp.ne.s32.totalorder %s154, %s157
      %p166 = scmp.eq.s32.totalorder %s19, 3
      %p167 = por %p165, %p166
      %p168 = scmp.ne.s32.totalorder %s157, %s158
      %p169 = scmp.eq.s32.totalorder %s19, 0
      %p170 = por %p168, %p169
      %p171 = scmp.ne.s32.totalorder %s157, %s158
      %p172 = scmp.eq.s32.totalorder %s20, 3
      %p173 = por %p171, %p172
      %p175 = scmp.ne.s32.totalorder %s158, %s174
      %p176 = scmp.eq.s32.totalorder %s20, 0
      %p177 = por %p175, %p176
      %p178 = scmp.le.s32.totalorder 1, %s14
      %p179 = scmp.lt.s32.totalorder %s14, 5
      %p180 = pnand %p178, %p179
      %p181 = pneg %p180
      // Predicated region
      $region9: #{tpu_custom_call.1} parent=5 // pred_check
        _
      $region10: #{tpu_custom_call.1} parent=5 // pred_check_branch
        %183 = sbr.rel (%p180) target = $region12
      $region11: #{tpu_custom_call.1} parent=5 // pred_region
        %s184 = ssub.s32 %s14, 1
        // Predicated region
        $region13: #{tpu_custom_call.1} parent=11 // pred_check
          %p185 = pneg %p47
        $region14: #{tpu_custom_call.1} parent=11 // pred_check_branch
          %187 = sbr.rel (%p185) target = $region16
        $region15: #{tpu_custom_call.1} parent=11 // pred_region
          _
        $region16: #{tpu_custom_call.1} parent=11 // pred_fallthru
          _
        // Predicated region
        $region17: #{tpu_custom_call.1} parent=11 // pred_check
          %p188 = pneg %p100
        $region18: #{tpu_custom_call.1} parent=11 // pred_check_branch
          %190 = sbr.rel (%p188) target = $region20
        $region19: #{tpu_custom_call.1} parent=11 // pred_region
          _
        $region20: #{tpu_custom_call.1} parent=11 // pred_fallthru
          _
        // Predicated region
        $region21: #{tpu_custom_call.1} parent=11 // pred_check
          %p191 = pneg %p121
        $region22: #{tpu_custom_call.1} parent=11 // pred_check_branch
          %193 = sbr.rel (%p191) target = $region24
        $region23: #{tpu_custom_call.1} parent=11 // pred_region
          _
        $region24: #{tpu_custom_call.1} parent=11 // pred_fallthru
          _
        // Predicated region
        $region25: #{tpu_custom_call.1} parent=11 // pred_check
          %p194 = pneg %p142
        $region26: #{tpu_custom_call.1} parent=11 // pred_check_branch
          %196 = sbr.rel (%p194) target = $region28
        $region27: #{tpu_custom_call.1} parent=11 // pred_region
          _
        $region28: #{tpu_custom_call.1} parent=11 // pred_fallthru
          _
      $region12: #{tpu_custom_call.1} parent=5 // pred_fallthru
        _
      %p197 = scmp.lt.s32.totalorder %s14, 4
      // Predicated region
      $region29: #{tpu_custom_call.1} parent=5 // pred_check
        %p198 = pneg %p197
      $region30: #{tpu_custom_call.1} parent=5 // pred_check_branch
        %200 = sbr.rel (%p198) target = $region32
      $region31: #{tpu_custom_call.1} parent=5 // pred_region
        // Predicated region
        $region33: #{tpu_custom_call.1} parent=31 // pred_check
          %p201 = pneg %p73
        $region34: #{tpu_custom_call.1} parent=31 // pred_check_branch
          %203 = sbr.rel (%p201) target = $region36
        $region35: #{tpu_custom_call.1} parent=31 // pred_region
          %s204 = ssub.s32 1, %s21
          %s205 = smul.u32 %s204, %s22
          %s206 = sadd.s32 %s205, %s21
          %p207 = scmp.lt.s32.totalorder %s206, 1
          %s208 = scalar_select %p207, %s206, 1
          %s209 = smul.addr %s208, 3
          %s210 = smul.addr %s209, 2
          %s211 = scalar_lea.vmem %s1, %s210
          %s212 = ssub.s32 1, %s21
          %s213 = smul.u32 %s212, %s22
          %s214 = sadd.s32 %s213, %s21
        $region36: #{tpu_custom_call.1} parent=31 // pred_fallthru
          _
      $region32: #{tpu_custom_call.1} parent=5 // pred_fallthru
        _
      %p215 = scmp.le.s32.totalorder 1, %s14
      %p216 = scmp.lt.s32.totalorder %s14, 5
      %p217 = pnand %p215, %p216
      %p218 = pneg %p217
      // Predicated region
      $region37: #{tpu_custom_call.1} parent=5 // pred_check
        _
      $region38: #{tpu_custom_call.1} parent=5 // pred_check_branch
        %220 = sbr.rel (%p217) target = $region40
      $region39: #{tpu_custom_call.1} parent=5 // pred_region
        %s221 = ssub.s32 %s14, 1
        %p222 = pneg %p47
        %p223 = pneg %p44
        %s224 = ssub.s32 1, %s23
        %s225 = smul.u32 %s224, %s24
        %s226 = sadd.s32 %s225, %s23
        %p227 = scmp.lt.s32.totalorder %s226, 1
        %s228 = scalar_select %p227, %s226, 1
        %s229 = smul.addr %s228, 3
        %s230 = smul.addr %s229, 2
        %s231 = scalar_lea.vmem %s1, %s230
        %p232 = pneg %p79
        %p233 = pneg %p76
        %p234 = pneg %p100
        %p235 = pneg %p97
        %p236 = pneg %p121
        %p237 = pneg %p118
        %p238 = pneg %p142
        %p239 = pneg %p139
        %p240 = pneg %p170
        %p241 = pneg %p167
        %s242 = sand.u32 %s157, 1
        %s243 = scalar_lea.sflag [#allocation6], %s242
        %s244 = sand.u32 %s157, 1
        %s245 = smul.addr %s244, 24
        %s246 = scalar_lea.vmem [#allocation5], %s245
        %s247 = ssub.s32 1, %s23
        %s248 = smul.u32 %s247, %s24
        %s249 = sadd.s32 %s248, %s23
        %p250 = scmp.lt.s32.totalorder %s249, 1
        %s251 = scalar_select %p250, %s249, 1
        %s252 = smul.addr %s251, 3
        %s253 = smul.addr %s252, 2
        %s254 = scalar_lea.vmem %s1, %s253
        %s255 = ssub.s32 1, %s23
        %s256 = smul.u32 %s255, %s24
        %s257 = sadd.s32 %s256, %s23
        %s258 = smul.u32 %s23, %s24
        %p260 = scmp.eq.s32.totalorder %s23, 0
        // Predicated region
        $region41: #{tpu_custom_call.1} parent=39 // pred_check
          %p261 = pneg %p260
        $region42: #{tpu_custom_call.1} parent=39 // pred_check_branch
          %263 = sbr.rel (%p261) target = $region44
        $region43: #{tpu_custom_call.1} parent=39 // pred_region
          %v264 = vld [vmem:[%s254] sm:$0x3f]
          %v265 = vld [vmem:[%s0] sm:$0xf]
          %s266 = scalar_lea.vmem %s0, 4
          %v267 = vld [vmem:[%s266] sm:$0xf]
          %v269 = vcombine.high %v264, %v264
          %v271 = vunpack.c.l.s4 1983009808
          %v272 = vunpack.c.0.s8 %v271
          %v273 = vlaneseq
          %v274 = vshrl.u32 %v273, 7
          %v275 = vsub.s32 %v272, %v274
          %v276 = vrot.slane %v264, %v275
          %v278 = vunpack.c.l.s4 1983009808
          %v279 = vunpack.c.0.s8 %v278
          %v280 = vlaneseq
          %v281 = vshrl.u32 %v280, 7
          %v282 = vsub.s32 %v279, %v281
          %v283 = vrot.slane %v269, %v282
          %v284 = vcombine.high %v276, %v276
          %285 = vrot.lane.b32.xlu0 %v276, 127
          %v286 = vpop.permute.xlu0 %285
          %287 = vrot.lane.b32.xlu0 %v284, 127
          %v288 = vpop.permute.xlu0 %287
          %289 = vrot.lane.b32.xlu0 %v283, 127
          %v290 = vpop.permute.xlu0 %289
          %vm291 = vcmask 1039360
          %v292 = vsel %vm291, %v286, %v288
          %v293 = vsel %vm291, %v288, %v290
          %vm294 = vcmask 31744
          %v296 = vsel %vm294, %v267, 0
          %vm298 = vcmask 1041408
          %v300 = vsel %vm298, %v292, 0
          %v303 = vsel %vm298, %v293, 0
          %v306 = vsel %vm298, %v290, 0
          %308 = vmatprep.subr.bf16.mxu0 %v303
          %309 = vmatpush1.bf16.msra.mxu0 %v300
          %310 = vmatprep.subr.bf16.mxu0 0
          %311 = vmatpush1.bf16.msra.mxu0 0
          %312 = vmatprep.subr.bf16.mxu0 0
          %313 = vmatpush1.bf16.msra.mxu0 0
          %314 = vmatprep.subr.bf16.mxu0 0
          %315 = vmatpush1.bf16.msra.mxu0 0
          %316 = vmatprep.subr.bf16.mxu0 0
          %317 = vmatpush1.bf16.msra.mxu0 0
          %318 = vmatprep.subr.bf16.mxu0 0
          %319 = vmatpush1.bf16.msra.mxu0 0
          %320 = vmatprep.subr.bf16.mxu0 0
          %321 = vmatpush1.bf16.msra.mxu0 0
          %322 = vmatprep.subr.bf16.mxu0 0
          %323 = vmatpush1.bf16.msra.mxu0 0
          %324 = vmatprep.subr.bf16.mxu0 0
          %325 = vmatpush1.bf16.msra.mxu0 0
          %326 = vmatprep.subr.bf16.mxu0 0
          %327 = vmatpush1.bf16.msra.mxu0 0
          %328 = vmatprep.subr.bf16.mxu0 0
          %329 = vmatpush1.bf16.msra.mxu0 0
          %330 = vmatprep.subr.bf16.mxu0 0
          %331 = vmatpush1.bf16.msra.mxu0 0
          %332 = vmatprep.subr.bf16.mxu0 0
          %333 = vmatpush1.bf16.msra.mxu0 0
          %334 = vmatprep.subr.bf16.mxu0 0
          %335 = vmatpush1.bf16.msra.mxu0 0
          %336 = vmatprep.subr.bf16.mxu0 0
          %337 = vmatpush1.bf16.msra.mxu0 0
          %338 = vmatprep.subr.bf16.mxu0 0
          %339 = vmatpush1.bf16.msra.mxu0 0
          %340 = vmatprep.mubr.bf16.mxu0 0
          %341 = vmatmul.mubr.bf16.gmra.mrb[0].mxu0 %v296
          %v342 = vpop.f32.mrb[0].mxu0
          %v343 = vadd.f32 0.0, %v342
          %v344 = vpop.f32.mrb[0].mxu0
          %v345 = vadd.f32 0.0, %v344
          %v346 = vpop.f32.mrb[0].mxu0
          %v347 = vpop.f32.mrb[0].mxu0
          %348 = vdwg.mxu0
          %349 = vmatprep.subr.bf16.mxu0 0
          %350 = vmatpush1.bf16.msra.mxu0 %v306
          %351 = vmatprep.subr.bf16.mxu0 0
          %352 = vmatpush1.bf16.msra.mxu0 0
          %353 = vmatprep.subr.bf16.mxu0 0
          %354 = vmatpush1.bf16.msra.mxu0 0
          %355 = vmatprep.subr.bf16.mxu0 0
          %356 = vmatpush1.bf16.msra.mxu0 0
          %357 = vmatprep.subr.bf16.mxu0 0
          %358 = vmatpush1.bf16.msra.mxu0 0
          %359 = vmatprep.subr.bf16.mxu0 0
          %360 = vmatpush1.bf16.msra.mxu0 0
          %361 = vmatprep.subr.bf16.mxu0 0
          %362 = vmatpush1.bf16.msra.mxu0 0
          %363 = vmatprep.subr.bf16.mxu0 0
          %364 = vmatpush1.bf16.msra.mxu0 0
          %365 = vmatprep.subr.bf16.mxu0 0
          %366 = vmatpush1.bf16.msra.mxu0 0
          %367 = vmatprep.subr.bf16.mxu0 0
          %368 = vmatpush1.bf16.msra.mxu0 0
          %369 = vmatprep.subr.bf16.mxu0 0
          %370 = vmatpush1.bf16.msra.mxu0 0
          %371 = vmatprep.subr.bf16.mxu0 0
          %372 = vmatpush1.bf16.msra.mxu0 0
          %373 = vmatprep.subr.bf16.mxu0 0
          %374 = vmatpush1.bf16.msra.mxu0 0
          %375 = vmatprep.subr.bf16.mxu0 0
          %376 = vmatpush1.bf16.msra.mxu0 0
          %377 = vmatprep.subr.bf16.mxu0 0
          %378 = vmatpush1.bf16.msra.mxu0 0
          %379 = vmatprep.subr.bf16.mxu0 0
          %380 = vmatpush1.bf16.msra.mxu0 0
          %381 = vmatprep.mubr.bf16.mxu0 0
          %382 = vmatmul.mubr.bf16.gmra.mrb[0].mxu0 %v296
          %v383 = vpop.f32.mrb[0].mxu0
          %v384 = vadd.f32 0.0, %v383
          %v385 = vpop.f32.mrb[0].mxu0
          %v386 = vpop.f32.mrb[0].mxu0
          %v387 = vpop.f32.mrb[0].mxu0
          %388 = vdwg.mxu0
          %v390 = vsel %vm294, %v265, 0
          %v393 = vsel %vm298, %v276, 0
          %v396 = vsel %vm298, %v284, 0
          %v399 = vsel %vm298, %v283, 0
          %401 = vmatprep.subr.bf16.mxu0 %v396
          %402 = vmatpush1.bf16.msra.mxu0 %v393
          %403 = vmatprep.subr.bf16.mxu0 0
          %404 = vmatpush1.bf16.msra.mxu0 0
          %405 = vmatprep.subr.bf16.mxu0 0
          %406 = vmatpush1.bf16.msra.mxu0 0
          %407 = vmatprep.subr.bf16.mxu0 0
          %408 = vmatpush1.bf16.msra.mxu0 0
          %409 = vmatprep.subr.bf16.mxu0 0
          %410 = vmatpush1.bf16.msra.mxu0 0
          %411 = vmatprep.subr.bf16.mxu0 0
          %412 = vmatpush1.bf16.msra.mxu0 0
          %413 = vmatprep.subr.bf16.mxu0 0
          %414 = vmatpush1.bf16.msra.mxu0 0
          %415 = vmatprep.subr.bf16.mxu0 0
          %416 = vmatpush1.bf16.msra.mxu0 0
          %417 = vmatprep.subr.bf16.mxu0 0
          %418 = vmatpush1.bf16.msra.mxu0 0
          %419 = vmatprep.subr.bf16.mxu0 0
          %420 = vmatpush1.bf16.msra.mxu0 0
          %421 = vmatprep.subr.bf16.mxu0 0
          %422 = vmatpush1.bf16.msra.mxu0 0
          %423 = vmatprep.subr.bf16.mxu0 0
          %424 = vmatpush1.bf16.msra.mxu0 0
          %425 = vmatprep.subr.bf16.mxu0 0
          %426 = vmatpush1.bf16.msra.mxu0 0
          %427 = vmatprep.subr.bf16.mxu0 0
          %428 = vmatpush1.bf16.msra.mxu0 0
          %429 = vmatprep.subr.bf16.mxu0 0
          %430 = vmatpush1.bf16.msra.mxu0 0
          %431 = vmatprep.subr.bf16.mxu0 0
          %432 = vmatpush1.bf16.msra.mxu0 0
          %433 = vmatprep.mubr.bf16.mxu0 0
          %434 = vmatmul.mubr.bf16.gmra.mrb[0].mxu0 %v390
          %v435 = vpop.f32.mrb[0].mxu0
          %v436 = vadd.f32 %v343, %v435
          %v437 = vpop.f32.mrb[0].mxu0
          %v438 = vadd.f32 %v345, %v437
          %v439 = vpop.f32.mrb[0].mxu0
          %v440 = vpop.f32.mrb[0].mxu0
          %441 = vdwg.mxu0
          %442 = vmatprep.subr.bf16.mxu0 0
          %443 = vmatpush1.bf16.msra.mxu0 %v399
          %444 = vmatprep.subr.bf16.mxu0 0
          %445 = vmatpush1.bf16.msra.mxu0 0
          %446 = vmatprep.subr.bf16.mxu0 0
          %447 = vmatpush1.bf16.msra.mxu0 0
          %448 = vmatprep.subr.bf16.mxu0 0
          %449 = vmatpush1.bf16.msra.mxu0 0
          %450 = vmatprep.subr.bf16.mxu0 0
          %451 = vmatpush1.bf16.msra.mxu0 0
          %452 = vmatprep.subr.bf16.mxu0 0
          %453 = vmatpush1.bf16.msra.mxu0 0
          %454 = vmatprep.subr.bf16.mxu0 0
          %455 = vmatpush1.bf16.msra.mxu0 0
          %456 = vmatprep.subr.bf16.mxu0 0
          %457 = vmatpush1.bf16.msra.mxu0 0
          %458 = vmatprep.subr.bf16.mxu0 0
          %459 = vmatpush1.bf16.msra.mxu0 0
          %460 = vmatprep.subr.bf16.mxu0 0
          %461 = vmatpush1.bf16.msra.mxu0 0
          %462 = vmatprep.subr.bf16.mxu0 0
          %463 = vmatpush1.bf16.msra.mxu0 0
          %464 = vmatprep.subr.bf16.mxu0 0
          %465 = vmatpush1.bf16.msra.mxu0 0
          %466 = vmatprep.subr.bf16.mxu0 0
          %467 = vmatpush1.bf16.msra.mxu0 0
          %468 = vmatprep.subr.bf16.mxu0 0
          %469 = vmatpush1.bf16.msra.mxu0 0
          %470 = vmatprep.subr.bf16.mxu0 0
          %471 = vmatpush1.bf16.msra.mxu0 0
          %472 = vmatprep.subr.bf16.mxu0 0
          %473 = vmatpush1.bf16.msra.mxu0 0
          %474 = vmatprep.mubr.bf16.mxu0 0
          %475 = vmatmul.mubr.bf16.gmra.mrb[0].mxu0 %v390
          %v476 = vpop.f32.mrb[0].mxu0
          %v477 = vadd.f32 %v384, %v476
          %v478 = vpop.f32.mrb[0].mxu0
          %v479 = vpop.f32.mrb[0].mxu0
          %v480 = vpop.f32.mrb[0].mxu0
          %481 = vdwg.mxu0
          %v482 = vld [vmem:[%s254] sm:$0x3f]
          %s483 = scalar_lea.vmem %s0, 8
          %v484 = vld [vmem:[%s483] sm:$0xf]
          %v486 = vcombine.high %v482, %v482
          %v488 = vunpack.c.l.s4 1983009808
          %v489 = vunpack.c.0.s8 %v488
          %v490 = vlaneseq
          %v491 = vshrl.u32 %v490, 7
          %v492 = vsub.s32 %v489, %v491
          %v493 = vrot.slane %v482, %v492
          %v495 = vunpack.c.l.s4 1983009808
          %v496 = vunpack.c.0.s8 %v495
          %v497 = vlaneseq
          %v498 = vshrl.u32 %v497, 7
          %v499 = vsub.s32 %v496, %v498
          %v500 = vrot.slane %v486, %v499
          %v501 = vcombine.high %v493, %v493
          %502 = vrot.lane.b32.xlu0 %v493, 126
          %v503 = vpop.permute.xlu0 %502
          %504 = vrot.lane.b32.xlu0 %v501, 126
          %v505 = vpop.permute.xlu0 %504
          %506 = vrot.lane.b32.xlu0 %v500, 126
          %v507 = vpop.permute.xlu0 %506
          %vm508 = vcmask 1031168
          %v509 = vsel %vm508, %v503, %v505
          %v510 = vsel %vm508, %v505, %v507
          %v512 = vsel %vm294, %v484, 0
          %v515 = vsel %vm298, %v509, 0
          %v518 = vsel %vm298, %v510, 0
          %v521 = vsel %vm298, %v507, 0
          %523 = vmatprep.subr.bf16.mxu0 %v518
          %524 = vmatpush1.bf16.msra.mxu0 %v515
          %525 = vmatprep.subr.bf16.mxu0 0
          %526 = vmatpush1.bf16.msra.mxu0 0
          %527 = vmatprep.subr.bf16.mxu0 0
          %528 = vmatpush1.bf16.msra.mxu0 0
          %529 = vmatprep.subr.bf16.mxu0 0
          %530 = vmatpush1.bf16.msra.mxu0 0
          %531 = vmatprep.subr.bf16.mxu0 0
          %532 = vmatpush1.bf16.msra.mxu0 0
          %533 = vmatprep.subr.bf16.mxu0 0
          %534 = vmatpush1.bf16.msra.mxu0 0
          %535 = vmatprep.subr.bf16.mxu0 0
          %536 = vmatpush1.bf16.msra.mxu0 0
          %537 = vmatprep.subr.bf16.mxu0 0
          %538 = vmatpush1.bf16.msra.mxu0 0
          %539 = vmatprep.subr.bf16.mxu0 0
          %540 = vmatpush1.bf16.msra.mxu0 0
          %541 = vmatprep.subr.bf16.mxu0 0
          %542 = vmatpush1.bf16.msra.mxu0 0
          %543 = vmatprep.subr.bf16.mxu0 0
          %544 = vmatpush1.bf16.msra.mxu0 0
          %545 = vmatprep.subr.bf16.mxu0 0
          %546 = vmatpush1.bf16.msra.mxu0 0
          %547 = vmatprep.subr.bf16.mxu0 0
          %548 = vmatpush1.bf16.msra.mxu0 0
          %549 = vmatprep.subr.bf16.mxu0 0
          %550 = vmatpush1.bf16.msra.mxu0 0
          %551 = vmatprep.subr.bf16.mxu0 0
          %552 = vmatpush1.bf16.msra.mxu0 0
          %553 = vmatprep.subr.bf16.mxu0 0
          %554 = vmatpush1.bf16.msra.mxu0 0
          %555 = vmatprep.mubr.bf16.mxu0 0
          %556 = vmatmul.mubr.bf16.gmra.mrb[0].mxu0 %v512
          %v557 = vpop.f32.mrb[0].mxu0
          %v558 = vadd.f32 0.0, %v557
          %v559 = vpop.f32.mrb[0].mxu0
          %v560 = vadd.f32 0.0, %v559
          %v561 = vpop.f32.mrb[0].mxu0
          %v562 = vpop.f32.mrb[0].mxu0
          %563 = vdwg.mxu0
          %564 = vmatprep.subr.bf16.mxu0 0
          %565 = vmatpush1.bf16.msra.mxu0 %v521
          %566 = vmatprep.subr.bf16.mxu0 0
          %567 = vmatpush1.bf16.msra.mxu0 0
          %568 = vmatprep.subr.bf16.mxu0 0
          %569 = vmatpush1.bf16.msra.mxu0 0
          %570 = vmatprep.subr.bf16.mxu0 0
          %571 = vmatpush1.bf16.msra.mxu0 0
          %572 = vmatprep.subr.bf16.mxu0 0
          %573 = vmatpush1.bf16.msra.mxu0 0
          %574 = vmatprep.subr.bf16.mxu0 0
          %575 = vmatpush1.bf16.msra.mxu0 0
          %576 = vmatprep.subr.bf16.mxu0 0
          %577 = vmatpush1.bf16.msra.mxu0 0
          %578 = vmatprep.subr.bf16.mxu0 0
          %579 = vmatpush1.bf16.msra.mxu0 0
          %580 = vmatprep.subr.bf16.mxu0 0
          %581 = vmatpush1.bf16.msra.mxu0 0
          %582 = vmatprep.subr.bf16.mxu0 0
          %583 = vmatpush1.bf16.msra.mxu0 0
          %584 = vmatprep.subr.bf16.mxu0 0
          %585 = vmatpush1.bf16.msra.mxu0 0
          %586 = vmatprep.subr.bf16.mxu0 0
          %587 = vmatpush1.bf16.msra.mxu0 0
          %588 = vmatprep.subr.bf16.mxu0 0
          %589 = vmatpush1.bf16.msra.mxu0 0
          %590 = vmatprep.subr.bf16.mxu0 0
          %591 = vmatpush1.bf16.msra.mxu0 0
          %592 = vmatprep.subr.bf16.mxu0 0
          %593 = vmatpush1.bf16.msra.mxu0 0
          %594 = vmatprep.subr.bf16.mxu0 0
          %595 = vmatpush1.bf16.msra.mxu0 0
          %596 = vmatprep.mubr.bf16.mxu0 0
          %597 = vmatmul.mubr.bf16.gmra.mrb[0].mxu0 %v512
          %v598 = vpop.f32.mrb[0].mxu0
          %v599 = vadd.f32 0.0, %v598
          %v600 = vpop.f32.mrb[0].mxu0
          %v601 = vpop.f32.mrb[0].mxu0
          %v602 = vpop.f32.mrb[0].mxu0
          %603 = vdwg.mxu0
          %v604 = vadd.f32 %v436, %v558
          %v605 = vadd.f32 %v438, %v560
          %v606 = vadd.f32 %v477, %v599
          %v607 = vld [vmem:[%s254] sm:$0x3f]
          %s608 = scalar_lea.vmem %s0, 12
          %v609 = vld [vmem:[%s608] sm:$0xf]
          %v611 = vcombine.high %v607, %v607
          %v613 = vunpack.c.l.s4 1983009808
          %v614 = vunpack.c.0.s8 %v613
          %v615 = vlaneseq
          %v616 = vshrl.u32 %v615, 7
          %v617 = vsub.s32 %v614, %v616
          %v618 = vrot.slane %v607, %v617
          %v620 = vunpack.c.l.s4 1983009808
          %v621 = vunpack.c.0.s8 %v620
          %v622 = vlaneseq
          %v623 = vshrl.u32 %v622, 7
          %v624 = vsub.s32 %v621, %v623
          %v625 = vrot.slane %v611, %v624
          %v626 = vcombine.high %v618, %v618
          %627 = vrot.lane.b32.xlu0 %v618, 110
          %v628 = vpop.permute.xlu0 %627
          %629 = vrot.lane.b32.xlu0 %v626, 110
          %v630 = vpop.permute.xlu0 %629
          %631 = vrot.lane.b32.xlu0 %v625, 110
          %v632 = vpop.permute.xlu0 %631
          %vm633 = vcmask 900096
          %v634 = vsel %vm633, %v628, %v630
          %v635 = vsel %vm633, %v630, %v632
          %v637 = vsel %vm294, %v609, 0
          %v640 = vsel %vm298, %v634, 0
          %v643 = vsel %vm298, %v635, 0
          %v646 = vsel %vm298, %v632, 0
          %648 = vmatprep.subr.bf16.mxu0 %v643
          %649 = vmatpush1.bf16.msra.mxu0 %v640
          %650 = vmatprep.subr.bf16.mxu0 0
          %651 = vmatpush1.bf16.msra.mxu0 0
          %652 = vmatprep.subr.bf16.mxu0 0
          %653 = vmatpush1.bf16.msra.mxu0 0
          %654 = vmatprep.subr.bf16.mxu0 0
          %655 = vmatpush1.bf16.msra.mxu0 0
          %656 = vmatprep.subr.bf16.mxu0 0
          %657 = vmatpush1.bf16.msra.mxu0 0
          %658 = vmatprep.subr.bf16.mxu0 0
          %659 = vmatpush1.bf16.msra.mxu0 0
          %660 = vmatprep.subr.bf16.mxu0 0
          %661 = vmatpush1.bf16.msra.mxu0 0
          %662 = vmatprep.subr.bf16.mxu0 0
          %663 = vmatpush1.bf16.msra.mxu0 0
          %664 = vmatprep.subr.bf16.mxu0 0
          %665 = vmatpush1.bf16.msra.mxu0 0
          %666 = vmatprep.subr.bf16.mxu0 0
          %667 = vmatpush1.bf16.msra.mxu0 0
          %668 = vmatprep.subr.bf16.mxu0 0
          %669 = vmatpush1.bf16.msra.mxu0 0
          %670 = vmatprep.subr.bf16.mxu0 0
          %671 = vmatpush1.bf16.msra.mxu0 0
          %672 = vmatprep.subr.bf16.mxu0 0
          %673 = vmatpush1.bf16.msra.mxu0 0
          %674 = vmatprep.subr.bf16.mxu0 0
          %675 = vmatpush1.bf16.msra.mxu0 0
          %676 = vmatprep.subr.bf16.mxu0 0
          %677 = vmatpush1.bf16.msra.mxu0 0
          %678 = vmatprep.subr.bf16.mxu0 0
          %679 = vmatpush1.bf16.msra.mxu0 0
          %680 = vmatprep.mubr.bf16.mxu0 0
          %681 = vmatmul.mubr.bf16.gmra.mrb[0].mxu0 %v637
          %v682 = vpop.f32.mrb[0].mxu0
          %v683 = vadd.f32 0.0, %v682
          %v684 = vpop.f32.mrb[0].mxu0
          %v685 = vadd.f32 0.0, %v684
          %v686 = vpop.f32.mrb[0].mxu0
          %v687 = vpop.f32.mrb[0].mxu0
          %688 = vdwg.mxu0
          %689 = vmatprep.subr.bf16.mxu0 0
          %690 = vmatpush1.bf16.msra.mxu0 %v646
          %691 = vmatprep.subr.bf16.mxu0 0
          %692 = vmatpush1.bf16.msra.mxu0 0
          %693 = vmatprep.subr.bf16.mxu0 0
          %694 = vmatpush1.bf16.msra.mxu0 0
          %695 = vmatprep.subr.bf16.mxu0 0
          %696 = vmatpush1.bf16.msra.mxu0 0
          %697 = vmatprep.subr.bf16.mxu0 0
          %698 = vmatpush1.bf16.msra.mxu0 0
          %699 = vmatprep.subr.bf16.mxu0 0
          %700 = vmatpush1.bf16.msra.mxu0 0
          %701 = vmatprep.subr.bf16.mxu0 0
          %702 = vmatpush1.bf16.msra.mxu0 0
          %703 = vmatprep.subr.bf16.mxu0 0
          %704 = vmatpush1.bf16.msra.mxu0 0
          %705 = vmatprep.subr.bf16.mxu0 0
          %706 = vmatpush1.bf16.msra.mxu0 0
          %707 = vmatprep.subr.bf16.mxu0 0
          %708 = vmatpush1.bf16.msra.mxu0 0
          %709 = vmatprep.subr.bf16.mxu0 0
          %710 = vmatpush1.bf16.msra.mxu0 0
          %711 = vmatprep.subr.bf16.mxu0 0
          %712 = vmatpush1.bf16.msra.mxu0 0
          %713 = vmatprep.subr.bf16.mxu0 0
          %714 = vmatpush1.bf16.msra.mxu0 0
          %715 = vmatprep.subr.bf16.mxu0 0
          %716 = vmatpush1.bf16.msra.mxu0 0
          %717 = vmatprep.subr.bf16.mxu0 0
          %718 = vmatpush1.bf16.msra.mxu0 0
          %719 = vmatprep.subr.bf16.mxu0 0
          %720 = vmatpush1.bf16.msra.mxu0 0
          %721 = vmatprep.mubr.bf16.mxu0 0
          %722 = vmatmul.mubr.bf16.gmra.mrb[0].mxu0 %v637
          %v723 = vpop.f32.mrb[0].mxu0
          %v724 = vadd.f32 0.0, %v723
          %v725 = vpop.f32.mrb[0].mxu0
          %v726 = vpop.f32.mrb[0].mxu0
          %v727 = vpop.f32.mrb[0].mxu0
          %728 = vdwg.mxu0
          %v729 = vadd.f32 %v604, %v683
          %v730 = vadd.f32 %v605, %v685
          %v731 = vadd.f32 %v606, %v724
          %v732 = vld [vmem:[%s254] sm:$0x3f]
          %s733 = scalar_lea.vmem %s0, 16
          %v734 = vld [vmem:[%s733] sm:$0xf]
          %v736 = vcombine.high %v732, %v732
          %v738 = vunpack.c.l.s4 1983009808
          %v739 = vunpack.c.0.s8 %v738
          %v740 = vlaneseq
          %v741 = vshrl.u32 %v740, 7
          %v742 = vsub.s32 %v739, %v741
          %v743 = vrot.slane %v732, %v742
          %v745 = vunpack.c.l.s4 1983009808
          %v746 = vunpack.c.0.s8 %v745
          %v747 = vlaneseq
          %v748 = vshrl.u32 %v747, 7
          %v749 = vsub.s32 %v746, %v748
          %v750 = vrot.slane %v736, %v749
          %v751 = vcombine.high %v743, %v743
          %752 = vrot.lane.b32.xlu0 %v743, 109
          %v753 = vpop.permute.xlu0 %752
          %754 = vrot.lane.b32.xlu0 %v751, 109
          %v755 = vpop.permute.xlu0 %754
          %756 = vrot.lane.b32.xlu0 %v750, 109
          %v757 = vpop.permute.xlu0 %756
          %vm758 = vcmask 891904
          %v759 = vsel %vm758, %v753, %v755
          %v760 = vsel %vm758, %v755, %v757
          %v762 = vsel %vm294, %v734, 0
          %v765 = vsel %vm298, %v759, 0
          %v768 = vsel %vm298, %v760, 0
          %v771 = vsel %vm298, %v757, 0
          %773 = vmatprep.subr.bf16.mxu0 %v768
          %774 = vmatpush1.bf16.msra.mxu0 %v765
          %775 = vmatprep.subr.bf16.mxu0 0
          %776 = vmatpush1.bf16.msra.mxu0 0
          %777 = vmatprep.subr.bf16.mxu0 0
          %778 = vmatpush1.bf16.msra.mxu0 0
          %779 = vmatprep.subr.bf16.mxu0 0
          %780 = vmatpush1.bf16.msra.mxu0 0
          %781 = vmatprep.subr.bf16.mxu0 0
          %782 = vmatpush1.bf16.msra.mxu0 0
          %783 = vmatprep.subr.bf16.mxu0 0
          %784 = vmatpush1.bf16.msra.mxu0 0
          %785 = vmatprep.subr.bf16.mxu0 0
          %786 = vmatpush1.bf16.msra.mxu0 0
          %787 = vmatprep.subr.bf16.mxu0 0
          %788 = vmatpush1.bf16.msra.mxu0 0
          %789 = vmatprep.subr.bf16.mxu0 0
          %790 = vmatpush1.bf16.msra.mxu0 0
          %791 = vmatprep.subr.bf16.mxu0 0
          %792 = vmatpush1.bf16.msra.mxu0 0
          %793 = vmatprep.subr.bf16.mxu0 0
          %794 = vmatpush1.bf16.msra.mxu0 0
          %795 = vmatprep.subr.bf16.mxu0 0
          %796 = vmatpush1.bf16.msra.mxu0 0
          %797 = vmatprep.subr.bf16.mxu0 0
          %798 = vmatpush1.bf16.msra.mxu0 0
          %799 = vmatprep.subr.bf16.mxu0 0
          %800 = vmatpush1.bf16.msra.mxu0 0
          %801 = vmatprep.subr.bf16.mxu0 0
          %802 = vmatpush1.bf16.msra.mxu0 0
          %803 = vmatprep.subr.bf16.mxu0 0
          %804 = vmatpush1.bf16.msra.mxu0 0
          %805 = vmatprep.mubr.bf16.mxu0 0
          %806 = vmatmul.mubr.bf16.gmra.mrb[0].mxu0 %v762
          %v807 = vpop.f32.mrb[0].mxu0
          %v808 = vadd.f32 0.0, %v807
          %v809 = vpop.f32.mrb[0].mxu0
          %v810 = vadd.f32 0.0, %v809
          %v811 = vpop.f32.mrb[0].mxu0
          %v812 = vpop.f32.mrb[0].mxu0
          %813 = vdwg.mxu0
          %814 = vmatprep.subr.bf16.mxu0 0
          %815 = vmatpush1.bf16.msra.mxu0 %v771
          %816 = vmatprep.subr.bf16.mxu0 0
          %817 = vmatpush1.bf16.msra.mxu0 0
          %818 = vmatprep.subr.bf16.mxu0 0
          %819 = vmatpush1.bf16.msra.mxu0 0
          %820 = vmatprep.subr.bf16.mxu0 0
          %821 = vmatpush1.bf16.msra.mxu0 0
          %822 = vmatprep.subr.bf16.mxu0 0
          %823 = vmatpush1.bf16.msra.mxu0 0
          %824 = vmatprep.subr.bf16.mxu0 0
          %825 = vmatpush1.bf16.msra.mxu0 0
          %826 = vmatprep.subr.bf16.mxu0 0
          %827 = vmatpush1.bf16.msra.mxu0 0
          %828 = vmatprep.subr.bf16.mxu0 0
          %829 = vmatpush1.bf16.msra.mxu0 0
          %830 = vmatprep.subr.bf16.mxu0 0
          %831 = vmatpush1.bf16.msra.mxu0 0
          %832 = vmatprep.subr.bf16.mxu0 0
          %833 = vmatpush1.bf16.msra.mxu0 0
          %834 = vmatprep.subr.bf16.mxu0 0
          %835 = vmatpush1.bf16.msra.mxu0 0
          %836 = vmatprep.subr.bf16.mxu0 0
          %837 = vmatpush1.bf16.msra.mxu0 0
          %838 = vmatprep.subr.bf16.mxu0 0
          %839 = vmatpush1.bf16.msra.mxu0 0
          %840 = vmatprep.subr.bf16.mxu0 0
          %841 = vmatpush1.bf16.msra.mxu0 0
          %842 = vmatprep.subr.bf16.mxu0 0
          %843 = vmatpush1.bf16.msra.mxu0 0
          %844 = vmatprep.subr.bf16.mxu0 0
          %845 = vmatpush1.bf16.msra.mxu0 0
          %846 = vmatprep.mubr.bf16.mxu0 0
          %847 = vmatmul.mubr.bf16.gmra.mrb[0].mxu0 %v762
          %v848 = vpop.f32.mrb[0].mxu0
          %v849 = vadd.f32 0.0, %v848
          %v850 = vpop.f32.mrb[0].mxu0
          %v851 = vpop.f32.mrb[0].mxu0
          %v852 = vpop.f32.mrb[0].mxu0
          %853 = vdwg.mxu0
          %v854 = vadd.f32 %v729, %v808
          %v855 = vadd.f32 %v730, %v810
          %v856 = vadd.f32 %v731, %v849
          %v857 = vld [vmem:[%s254] sm:$0x3f]
          %s858 = scalar_lea.vmem %s0, 20
          %v859 = vld [vmem:[%s858] sm:$0xf]
          %v861 = vcombine.high %v857, %v857
          %v863 = vunpack.c.l.s4 1983009808
          %v864 = vunpack.c.0.s8 %v863
          %v865 = vlaneseq
          %v866 = vshrl.u32 %v865, 7
          %v867 = vsub.s32 %v864, %v866
          %v868 = vrot.slane %v857, %v867
          %v870 = vunpack.c.l.s4 1983009808
          %v871 = vunpack.c.0.s8 %v870
          %v872 = vlaneseq
          %v873 = vshrl.u32 %v872, 7
          %v874 = vsub.s32 %v871, %v873
          %v875 = vrot.slane %v861, %v874
          %v876 = vcombine.high %v868, %v868
          %877 = vrot.lane.b32.xlu0 %v868, 108
          %v878 = vpop.permute.xlu0 %877
          %879 = vrot.lane.b32.xlu0 %v876, 108
          %v880 = vpop.permute.xlu0 %879
          %881 = vrot.lane.b32.xlu0 %v875, 108
          %v882 = vpop.permute.xlu0 %881
          %vm883 = vcmask 883712
          %v884 = vsel %vm883, %v878, %v880
          %v885 = vsel %vm883, %v880, %v882
          %v887 = vsel %vm294, %v859, 0
          %v890 = vsel %vm298, %v884, 0
          %v893 = vsel %vm298, %v885, 0
          %v896 = vsel %vm298, %v882, 0
          %898 = vmatprep.subr.bf16.mxu0 %v893
          %899 = vmatpush1.bf16.msra.mxu0 %v890
          %900 = vmatprep.subr.bf16.mxu0 0
          %901 = vmatpush1.bf16.msra.mxu0 0
          %902 = vmatprep.subr.bf16.mxu0 0
          %903 = vmatpush1.bf16.msra.mxu0 0
          %904 = vmatprep.subr.bf16.mxu0 0
          %905 = vmatpush1.bf16.msra.mxu0 0
          %906 = vmatprep.subr.bf16.mxu0 0
          %907 = vmatpush1.bf16.msra.mxu0 0
          %908 = vmatprep.subr.bf16.mxu0 0
          %909 = vmatpush1.bf16.msra.mxu0 0
          %910 = vmatprep.subr.bf16.mxu0 0
          %911 = vmatpush1.bf16.msra.mxu0 0
          %912 = vmatprep.subr.bf16.mxu0 0
          %913 = vmatpush1.bf16.msra.mxu0 0
          %914 = vmatprep.subr.bf16.mxu0 0
          %915 = vmatpush1.bf16.msra.mxu0 0
          %916 = vmatprep.subr.bf16.mxu0 0
          %917 = vmatpush1.bf16.msra.mxu0 0
          %918 = vmatprep.subr.bf16.mxu0 0
          %919 = vmatpush1.bf16.msra.mxu0 0
          %920 = vmatprep.subr.bf16.mxu0 0
          %921 = vmatpush1.bf16.msra.mxu0 0
          %922 = vmatprep.subr.bf16.mxu0 0
          %923 = vmatpush1.bf16.msra.mxu0 0
          %924 = vmatprep.subr.bf16.mxu0 0
          %925 = vmatpush1.bf16.msra.mxu0 0
          %926 = vmatprep.subr.bf16.mxu0 0
          %927 = vmatpush1.bf16.msra.mxu0 0
          %928 = vmatprep.subr.bf16.mxu0 0
          %929 = vmatpush1.bf16.msra.mxu0 0
          %930 = vmatprep.mubr.bf16.mxu0 0
          %931 = vmatmul.mubr.bf16.gmra.mrb[0].mxu0 %v887
          %v932 = vpop.f32.mrb[0].mxu0
          %v933 = vadd.f32 0.0, %v932
          %v934 = vpop.f32.mrb[0].mxu0
          %v935 = vadd.f32 0.0, %v934
          %v936 = vpop.f32.mrb[0].mxu0
          %v937 = vpop.f32.mrb[0].mxu0
          %938 = vdwg.mxu0
          %939 = vmatprep.subr.bf16.mxu0 0
          %940 = vmatpush1.bf16.msra.mxu0 %v896
          %941 = vmatprep.subr.bf16.mxu0 0
          %942 = vmatpush1.bf16.msra.mxu0 0
          %943 = vmatprep.subr.bf16.mxu0 0
          %944 = vmatpush1.bf16.msra.mxu0 0
          %945 = vmatprep.subr.bf16.mxu0 0
          %946 = vmatpush1.bf16.msra.mxu0 0
          %947 = vmatprep.subr.bf16.mxu0 0
          %948 = vmatpush1.bf16.msra.mxu0 0
          %949 = vmatprep.subr.bf16.mxu0 0
          %950 = vmatpush1.bf16.msra.mxu0 0
          %951 = vmatprep.subr.bf16.mxu0 0
          %952 = vmatpush1.bf16.msra.mxu0 0
          %953 = vmatprep.subr.bf16.mxu0 0
          %954 = vmatpush1.bf16.msra.mxu0 0
          %955 = vmatprep.subr.bf16.mxu0 0
          %956 = vmatpush1.bf16.msra.mxu0 0
          %957 = vmatprep.subr.bf16.mxu0 0
          %958 = vmatpush1.bf16.msra.mxu0 0
          %959 = vmatprep.subr.bf16.mxu0 0
          %960 = vmatpush1.bf16.msra.mxu0 0
          %961 = vmatprep.subr.bf16.mxu0 0
          %962 = vmatpush1.bf16.msra.mxu0 0
          %963 = vmatprep.subr.bf16.mxu0 0
          %964 = vmatpush1.bf16.msra.mxu0 0
          %965 = vmatprep.subr.bf16.mxu0 0
          %966 = vmatpush1.bf16.msra.mxu0 0
          %967 = vmatprep.subr.bf16.mxu0 0
          %968 = vmatpush1.bf16.msra.mxu0 0
          %969 = vmatprep.subr.bf16.mxu0 0
          %970 = vmatpush1.bf16.msra.mxu0 0
          %971 = vmatprep.mubr.bf16.mxu0 0
          %972 = vmatmul.mubr.bf16.gmra.mrb[0].mxu0 %v887
          %v973 = vpop.f32.mrb[0].mxu0
          %v974 = vadd.f32 0.0, %v973
          %v975 = vpop.f32.mrb[0].mxu0
          %v976 = vpop.f32.mrb[0].mxu0
          %v977 = vpop.f32.mrb[0].mxu0
          %978 = vdwg.mxu0
          %v979 = vadd.f32 %v854, %v933
          %v980 = vadd.f32 %v855, %v935
          %v981 = vadd.f32 %v856, %v974
          %v982 = vld [vmem:[%s254] sm:$0x3f]
          %s983 = scalar_lea.vmem %s0, 24
          %v984 = vld [vmem:[%s983] sm:$0xf]
          %v986 = vcombine.high %v982, %v982
          %v988 = vunpack.c.l.s4 1983009808
          %v989 = vunpack.c.0.s8 %v988
          %v990 = vlaneseq
          %v991 = vshrl.u32 %v990, 7
          %v992 = vsub.s32 %v989, %v991
          %v993 = vrot.slane %v982, %v992
          %v995 = vunpack.c.l.s4 1983009808
          %v996 = vunpack.c.0.s8 %v995
          %v997 = vlaneseq
          %v998 = vshrl.u32 %v997, 7
          %v999 = vsub.s32 %v996, %v998
          %v1000 = vrot.slane %v986, %v999
          %v1001 = vcombine.high %v993, %v993
          %1002 = vrot.lane.b32.xlu0 %v993, 92
          %v1003 = vpop.permute.xlu0 %1002
          %1004 = vrot.lane.b32.xlu0 %v1001, 92
          %v1005 = vpop.permute.xlu0 %1004
          %1006 = vrot.lane.b32.xlu0 %v1000, 92
          %v1007 = vpop.permute.xlu0 %1006
          %vm1008 = vcmask 752640
          %v1009 = vsel %vm1008, %v1003, %v1005
          %v1010 = vsel %vm1008, %v1005, %v1007
          %v1012 = vsel %vm294, %v984, 0
          %v1015 = vsel %vm298, %v1009, 0
          %v1018 = vsel %vm298, %v1010, 0
          %v1021 = vsel %vm298, %v1007, 0
          %1023 = vmatprep.subr.bf16.mxu0 %v1018
          %1024 = vmatpush1.bf16.msra.mxu0 %v1015
          %1025 = vmatprep.subr.bf16.mxu0 0
          %1026 = vmatpush1.bf16.msra.mxu0 0
          %1027 = vmatprep.subr.bf16.mxu0 0
          %1028 = vmatpush1.bf16.msra.mxu0 0
          %1029 = vmatprep.subr.bf16.mxu0 0
          %1030 = vmatpush1.bf16.msra.mxu0 0
          %1031 = vmatprep.subr.bf16.mxu0 0
          %1032 = vmatpush1.bf16.msra.mxu0 0
          %1033 = vmatprep.subr.bf16.mxu0 0
          %1034 = vmatpush1.bf16.msra.mxu0 0
          %1035 = vmatprep.subr.bf16.mxu0 0
          %1036 = vmatpush1.bf16.msra.mxu0 0
          %1037 = vmatprep.subr.bf16.mxu0 0
          %1038 = vmatpush1.bf16.msra.mxu0 0
          %1039 = vmatprep.subr.bf16.mxu0 0
          %1040 = vmatpush1.bf16.msra.mxu0 0
          %1041 = vmatprep.subr.bf16.mxu0 0
          %1042 = vmatpush1.bf16.msra.mxu0 0
          %1043 = vmatprep.subr.bf16.mxu0 0
          %1044 = vmatpush1.bf16.msra.mxu0 0
          %1045 = vmatprep.subr.bf16.mxu0 0
          %1046 = vmatpush1.bf16.msra.mxu0 0
          %1047 = vmatprep.subr.bf16.mxu0 0
          %1048 = vmatpush1.bf16.msra.mxu0 0
          %1049 = vmatprep.subr.bf16.mxu0 0
          %1050 = vmatpush1.bf16.msra.mxu0 0
          %1051 = vmatprep.subr.bf16.mxu0 0
          %1052 = vmatpush1.bf16.msra.mxu0 0
          %1053 = vmatprep.subr.bf16.mxu0 0
          %1054 = vmatpush1.bf16.msra.mxu0 0
          %1055 = vmatprep.mubr.bf16.mxu0 0
          %1056 = vmatmul.mubr.bf16.gmra.mrb[0].mxu0 %v1012
          %v1057 = vpop.f32.mrb[0].mxu0
          %v1058 = vadd.f32 0.0, %v1057
          %v1059 = vpop.f32.mrb[0].mxu0
          %v1060 = vadd.f32 0.0, %v1059
          %v1061 = vpop.f32.mrb[0].mxu0
          %v1062 = vpop.f32.mrb[0].mxu0
          %1063 = vdwg.mxu0
          %1064 = vmatprep.subr.bf16.mxu0 0
          %1065 = vmatpush1.bf16.msra.mxu0 %v1021
          %1066 = vmatprep.subr.bf16.mxu0 0
          %1067 = vmatpush1.bf16.msra.mxu0 0
          %1068 = vmatprep.subr.bf16.mxu0 0
          %1069 = vmatpush1.bf16.msra.mxu0 0
          %1070 = vmatprep.subr.bf16.mxu0 0
          %1071 = vmatpush1.bf16.msra.mxu0 0
          %1072 = vmatprep.subr.bf16.mxu0 0
          %1073 = vmatpush1.bf16.msra.mxu0 0
          %1074 = vmatprep.subr.bf16.mxu0 0
          %1075 = vmatpush1.bf16.msra.mxu0 0
          %1076 = vmatprep.subr.bf16.mxu0 0
          %1077 = vmatpush1.bf16.msra.mxu0 0
          %1078 = vmatprep.subr.bf16.mxu0 0
          %1079 = vmatpush1.bf16.msra.mxu0 0
          %1080 = vmatprep.subr.bf16.mxu0 0
          %1081 = vmatpush1.bf16.msra.mxu0 0
          %1082 = vmatprep.subr.bf16.mxu0 0
          %1083 = vmatpush1.bf16.msra.mxu0 0
          %1084 = vmatprep.subr.bf16.mxu0 0
          %1085 = vmatpush1.bf16.msra.mxu0 0
          %1086 = vmatprep.subr.bf16.mxu0 0
          %1087 = vmatpush1.bf16.msra.mxu0 0
          %1088 = vmatprep.subr.bf16.mxu0 0
          %1089 = vmatpush1.bf16.msra.mxu0 0
          %1090 = vmatprep.subr.bf16.mxu0 0
          %1091 = vmatpush1.bf16.msra.mxu0 0
          %1092 = vmatprep.subr.bf16.mxu0 0
          %1093 = vmatpush1.bf16.msra.mxu0 0
          %1094 = vmatprep.subr.bf16.mxu0 0
          %1095 = vmatpush1.bf16.msra.mxu0 0
          %1096 = vmatprep.mubr.bf16.mxu0 0
          %1097 = vmatmul.mubr.bf16.gmra.mrb[0].mxu0 %v1012
          %v1098 = vpop.f32.mrb[0].mxu0
          %v1099 = vadd.f32 0.0, %v1098
          %v1100 = vpop.f32.mrb[0].mxu0
          %v1101 = vpop.f32.mrb[0].mxu0
          %v1102 = vpop.f32.mrb[0].mxu0
          %1103 = vdwg.mxu0
          %v1104 = vadd.f32 %v979, %v1058
          %v1105 = vadd.f32 %v980, %v1060
          %v1106 = vadd.f32 %v981, %v1099
          %v1107 = vld [vmem:[%s254] sm:$0x3f]
          %s1108 = scalar_lea.vmem %s0, 28
          %v1109 = vld [vmem:[%s1108] sm:$0xf]
          %v1111 = vcombine.high %v1107, %v1107
          %v1113 = vunpack.c.l.s4 1983009808
          %v1114 = vunpack.c.0.s8 %v1113
          %v1115 = vlaneseq
          %v1116 = vshrl.u32 %v1115, 7
          %v1117 = vsub.s32 %v1114, %v1116
          %v1118 = vrot.slane %v1107, %v1117
          %v1120 = vunpack.c.l.s4 1983009808
          %v1121 = vunpack.c.0.s8 %v1120
          %v1122 = vlaneseq
          %v1123 = vshrl.u32 %v1122, 7
          %v1124 = vsub.s32 %v1121, %v1123
          %v1125 = vrot.slane %v1111, %v1124
          %v1126 = vcombine.high %v1118, %v1118
          %1127 = vrot.lane.b32.xlu0 %v1118, 91
          %v1128 = vpop.permute.xlu0 %1127
          %1129 = vrot.lane.b32.xlu0 %v1126, 91
          %v1130 = vpop.permute.xlu0 %1129
          %1131 = vrot.lane.b32.xlu0 %v1125, 91
          %v1132 = vpop.permute.xlu0 %1131
          %vm1133 = vcmask 744448
          %v1134 = vsel %vm1133, %v1128, %v1130
          %v1135 = vsel %vm1133, %v1130, %v1132
          %v1137 = vsel %vm294, %v1109, 0
          %v1140 = vsel %vm298, %v1134, 0
          %v1143 = vsel %vm298, %v1135, 0
          %v1146 = vsel %vm298, %v1132, 0
          %1148 = vmatprep.subr.bf16.mxu0 %v1143
          %1149 = vmatpush1.bf16.msra.mxu0 %v1140
          %1150 = vmatprep.subr.bf16.mxu0 0
          %1151 = vmatpush1.bf16.msra.mxu0 0
          %1152 = vmatprep.subr.bf16.mxu0 0
          %1153 = vmatpush1.bf16.msra.mxu0 0
          %1154 = vmatprep.subr.bf16.mxu0 0
          %1155 = vmatpush1.bf16.msra.mxu0 0
          %1156 = vmatprep.subr.bf16.mxu0 0
          %1157 = vmatpush1.bf16.msra.mxu0 0
          %1158 = vmatprep.subr.bf16.mxu0 0
          %1159 = vmatpush1.bf16.msra.mxu0 0
          %1160 = vmatprep.subr.bf16.mxu0 0
          %1161 = vmatpush1.bf16.msra.mxu0 0
          %1162 = vmatprep.subr.bf16.mxu0 0
          %1163 = vmatpush1.bf16.msra.mxu0 0
          %1164 = vmatprep.subr.bf16.mxu0 0
          %1165 = vmatpush1.bf16.msra.mxu0 0
          %1166 = vmatprep.subr.bf16.mxu0 0
          %1167 = vmatpush1.bf16.msra.mxu0 0
          %1168 = vmatprep.subr.bf16.mxu0 0
          %1169 = vmatpush1.bf16.msra.mxu0 0
          %1170 = vmatprep.subr.bf16.mxu0 0
          %1171 = vmatpush1.bf16.msra.mxu0 0
          %1172 = vmatprep.subr.bf16.mxu0 0
          %1173 = vmatpush1.bf16.msra.mxu0 0
          %1174 = vmatprep.subr.bf16.mxu0 0
          %1175 = vmatpush1.bf16.msra.mxu0 0
          %1176 = vmatprep.subr.bf16.mxu0 0
          %1177 = vmatpush1.bf16.msra.mxu0 0
          %1178 = vmatprep.subr.bf16.mxu0 0
          %1179 = vmatpush1.bf16.msra.mxu0 0
          %1180 = vmatprep.mubr.bf16.mxu0 0
          %1181 = vmatmul.mubr.bf16.gmra.mrb[0].mxu0 %v1137
          %v1182 = vpop.f32.mrb[0].mxu0
          %v1183 = vadd.f32 0.0, %v1182
          %v1184 = vpop.f32.mrb[0].mxu0
          %v1185 = vadd.f32 0.0, %v1184
          %v1186 = vpop.f32.mrb[0].mxu0
          %v1187 = vpop.f32.mrb[0].mxu0
          %1188 = vdwg.mxu0
          %1189 = vmatprep.subr.bf16.mxu0 0
          %1190 = vmatpush1.bf16.msra.mxu0 %v1146
          %1191 = vmatprep.subr.bf16.mxu0 0
          %1192 = vmatpush1.bf16.msra.mxu0 0
          %1193 = vmatprep.subr.bf16.mxu0 0
          %1194 = vmatpush1.bf16.msra.mxu0 0
          %1195 = vmatprep.subr.bf16.mxu0 0
          %1196 = vmatpush1.bf16.msra.mxu0 0
          %1197 = vmatprep.subr.bf16.mxu0 0
          %1198 = vmatpush1.bf16.msra.mxu0 0
          %1199 = vmatprep.subr.bf16.mxu0 0
          %1200 = vmatpush1.bf16.msra.mxu0 0
          %1201 = vmatprep.subr.bf16.mxu0 0
          %1202 = vmatpush1.bf16.msra.mxu0 0
          %1203 = vmatprep.subr.bf16.mxu0 0
          %1204 = vmatpush1.bf16.msra.mxu0 0
          %1205 = vmatprep.subr.bf16.mxu0 0
          %1206 = vmatpush1.bf16.msra.mxu0 0
          %1207 = vmatprep.subr.bf16.mxu0 0
          %1208 = vmatpush1.bf16.msra.mxu0 0
          %1209 = vmatprep.subr.bf16.mxu0 0
          %1210 = vmatpush1.bf16.msra.mxu0 0
          %1211 = vmatprep.subr.bf16.mxu0 0
          %1212 = vmatpush1.bf16.msra.mxu0 0
          %1213 = vmatprep.subr.bf16.mxu0 0
          %1214 = vmatpush1.bf16.msra.mxu0 0
          %1215 = vmatprep.subr.bf16.mxu0 0
          %1216 = vmatpush1.bf16.msra.mxu0 0
          %1217 = vmatprep.subr.bf16.mxu0 0
          %1218 = vmatpush1.bf16.msra.mxu0 0
          %1219 = vmatprep.subr.bf16.mxu0 0
          %1220 = vmatpush1.bf16.msra.mxu0 0
          %1221 = vmatprep.mubr.bf16.mxu0 0
          %1222 = vmatmul.mubr.bf16.gmra.mrb[0].mxu0 %v1137
          %v1223 = vpop.f32.mrb[0].mxu0
          %v1224 = vadd.f32 0.0, %v1223
          %v1225 = vpop.f32.mrb[0].mxu0
          %v1226 = vpop.f32.mrb[0].mxu0
          %v1227 = vpop.f32.mrb[0].mxu0
          %1228 = vdwg.mxu0
          %v1229 = vadd.f32 %v1104, %v1183
          %v1230 = vadd.f32 %v1105, %v1185
          %v1231 = vadd.f32 %v1106, %v1224
          %v1232 = vld [vmem:[%s254] sm:$0x3f]
          %s1233 = scalar_lea.vmem %s0, 32
          %v1234 = vld [vmem:[%s1233] sm:$0xf]
          %v1236 = vcombine.high %v1232, %v1232
          %v1238 = vunpack.c.l.s4 1983009808
          %v1239 = vunpack.c.0.s8 %v1238
          %v1240 = vlaneseq
          %v1241 = vshrl.u32 %v1240, 7
          %v1242 = vsub.s32 %v1239, %v1241
          %v1243 = vrot.slane %v1232, %v1242
          %v1245 = vunpack.c.l.s4 1983009808
          %v1246 = vunpack.c.0.s8 %v1245
          %v1247 = vlaneseq
          %v1248 = vshrl.u32 %v1247, 7
          %v1249 = vsub.s32 %v1246, %v1248
          %v1250 = vrot.slane %v1236, %v1249
          %v1251 = vcombine.high %v1243, %v1243
          %1252 = vrot.lane.b32.xlu0 %v1243, 90
          %v1253 = vpop.permute.xlu0 %1252
          %1254 = vrot.lane.b32.xlu0 %v1251, 90
          %v1255 = vpop.permute.xlu0 %1254
          %1256 = vrot.lane.b32.xlu0 %v1250, 90
          %v1257 = vpop.permute.xlu0 %1256
          %vm1258 = vcmask 736256
          %v1259 = vsel %vm1258, %v1253, %v1255
          %v1260 = vsel %vm1258, %v1255, %v1257
          %v1262 = vsel %vm294, %v1234, 0
          %v1265 = vsel %vm298, %v1259, 0
          %v1268 = vsel %vm298, %v1260, 0
          %v1271 = vsel %vm298, %v1257, 0
          %1273 = vmatprep.subr.bf16.mxu0 %v1268
          %1274 = vmatpush1.bf16.msra.mxu0 %v1265
          %1275 = vmatprep.subr.bf16.mxu0 0
          %1276 = vmatpush1.bf16.msra.mxu0 0
          %1277 = vmatprep.subr.bf16.mxu0 0
          %1278 = vmatpush1.bf16.msra.mxu0 0
          %1279 = vmatprep.subr.bf16.mxu0 0
          %1280 = vmatpush1.bf16.msra.mxu0 0
          %1281 = vmatprep.subr.bf16.mxu0 0
          %1282 = vmatpush1.bf16.msra.mxu0 0
          %1283 = vmatprep.subr.bf16.mxu0 0
          %1284 = vmatpush1.bf16.msra.mxu0 0
          %1285 = vmatprep.subr.bf16.mxu0 0
          %1286 = vmatpush1.bf16.msra.mxu0 0
          %1287 = vmatprep.subr.bf16.mxu0 0
          %1288 = vmatpush1.bf16.msra.mxu0 0
          %1289 = vmatprep.subr.bf16.mxu0 0
          %1290 = vmatpush1.bf16.msra.mxu0 0
          %1291 = vmatprep.subr.bf16.mxu0 0
          %1292 = vmatpush1.bf16.msra.mxu0 0
          %1293 = vmatprep.subr.bf16.mxu0 0
          %1294 = vmatpush1.bf16.msra.mxu0 0
          %1295 = vmatprep.subr.bf16.mxu0 0
          %1296 = vmatpush1.bf16.msra.mxu0 0
          %1297 = vmatprep.subr.bf16.mxu0 0
          %1298 = vmatpush1.bf16.msra.mxu0 0
          %1299 = vmatprep.subr.bf16.mxu0 0
          %1300 = vmatpush1.bf16.msra.mxu0 0
          %1301 = vmatprep.subr.bf16.mxu0 0
          %1302 = vmatpush1.bf16.msra.mxu0 0
          %1303 = vmatprep.subr.bf16.mxu0 0
          %1304 = vmatpush1.bf16.msra.mxu0 0
          %1305 = vmatprep.mubr.bf16.mxu0 0
          %1306 = vmatmul.mubr.bf16.gmra.mrb[0].mxu0 %v1262
          %v1307 = vpop.f32.mrb[0].mxu0
          %v1308 = vadd.f32 0.0, %v1307
          %v1309 = vpop.f32.mrb[0].mxu0
          %v1310 = vadd.f32 0.0, %v1309
          %v1311 = vpop.f32.mrb[0].mxu0
          %v1312 = vpop.f32.mrb[0].mxu0
          %1313 = vdwg.mxu0
          %1314 = vmatprep.subr.bf16.mxu0 0
          %1315 = vmatpush1.bf16.msra.mxu0 %v1271
          %1316 = vmatprep.subr.bf16.mxu0 0
          %1317 = vmatpush1.bf16.msra.mxu0 0
          %1318 = vmatprep.subr.bf16.mxu0 0
          %1319 = vmatpush1.bf16.msra.mxu0 0
          %1320 = vmatprep.subr.bf16.mxu0 0
          %1321 = vmatpush1.bf16.msra.mxu0 0
          %1322 = vmatprep.subr.bf16.mxu0 0
          %1323 = vmatpush1.bf16.msra.mxu0 0
          %1324 = vmatprep.subr.bf16.mxu0 0
          %1325 = vmatpush1.bf16.msra.mxu0 0
          %1326 = vmatprep.subr.bf16.mxu0 0
          %1327 = vmatpush1.bf16.msra.mxu0 0
          %1328 = vmatprep.subr.bf16.mxu0 0
          %1329 = vmatpush1.bf16.msra.mxu0 0
          %1330 = vmatprep.subr.bf16.mxu0 0
          %1331 = vmatpush1.bf16.msra.mxu0 0
          %1332 = vmatprep.subr.bf16.mxu0 0
          %1333 = vmatpush1.bf16.msra.mxu0 0
          %1334 = vmatprep.subr.bf16.mxu0 0
          %1335 = vmatpush1.bf16.msra.mxu0 0
          %1336 = vmatprep.subr.bf16.mxu0 0
          %1337 = vmatpush1.bf16.msra.mxu0 0
          %1338 = vmatprep.subr.bf16.mxu0 0
          %1339 = vmatpush1.bf16.msra.mxu0 0
          %1340 = vmatprep.subr.bf16.mxu0 0
          %1341 = vmatpush1.bf16.msra.mxu0 0
          %1342 = vmatprep.subr.bf16.mxu0 0
          %1343 = vmatpush1.bf16.msra.mxu0 0
          %1344 = vmatprep.subr.bf16.mxu0 0
          %1345 = vmatpush1.bf16.msra.mxu0 0
          %1346 = vmatprep.mubr.bf16.mxu0 0
          %1347 = vmatmul.mubr.bf16.gmra.mrb[0].mxu0 %v1262
          %v1348 = vpop.f32.mrb[0].mxu0
          %v1349 = vadd.f32 0.0, %v1348
          %v1350 = vpop.f32.mrb[0].mxu0
          %v1351 = vpop.f32.mrb[0].mxu0
          %v1352 = vpop.f32.mrb[0].mxu0
          %1353 = vdwg.mxu0
          %v1354 = vadd.f32 %v1229, %v1308
          %v1355 = vadd.f32 %v1230, %v1310
          %v1356 = vadd.f32 %v1231, %v1349
          %s1357 = smul.u32 %s24, 3
          %s1358 = smul.addr %s1357, 8
          %s1359 = scalar_lea.vmem [#allocation2], %s1358
          %1360 = vst [vmem:[%s1359] sm:$0xff] %v1354
          %1361 = vst [vmem:[%s1359 + $0x8] sm:$0xff] %v1355
          %vm1362 = vcmask 261120
          %1363 = vst.msk [vmem:[%s1359 + $0x10] sm:$0xff] %vm1362, %v1356
        $region44: #{tpu_custom_call.1} parent=39 // pred_fallthru
          _
        %p1364 = scmp.eq.s32.totalorder %s23, 1
        %p1365 = scmp.eq.s32.totalorder %s24, 0
        %p1366 = pnand %p1364, %p1365
        %p1367 = pneg %p1366
        // Predicated region
        $region45: #{tpu_custom_call.1} parent=39 // pred_check
          _
        $region46: #{tpu_custom_call.1} parent=39 // pred_check_branch
          %1369 = sbr.rel (%p1366) target = $region48
        $region47: #{tpu_custom_call.1} parent=39 // pred_region
          %v1370 = vld [vmem:[%s2] sm:$0x7]
          loop: start=0, step=1, limit=2
          $region49: #{tpu_custom_call.1} parent=47 // loop_pre_header
            _
          $region50: #{tpu_custom_call.1} parent=47 // loop_header
            %s1372 = sphi 0, %s1376
            %p1373 = scmp.ge.s32.totalorder %s1372, 2
            %v1377 = vphi 0.0, %v1409
          $region51: #{tpu_custom_call.1} parent=47 // loop_header_branch
            %1375 = sbr.rel (%p1373) target = $region55
          $region52: #{tpu_custom_call.1} parent=47 // loop_body
            %s1378 = smul.u32 %s1372, 3
            %s1379 = smul.addr %s1378, 8
            %s1380 = scalar_lea.vmem [#allocation2], %s1379
            %v1381 = vld [vmem:[%s1380] sm:$0xff]
            %v1382 = vld [vmem:[%s1380 + $0x8] sm:$0xff]
            %v1383 = vld [vmem:[%s1380 + $0x10] sm:$0xff]
            %v1385 = vlaneseq
            %v1386 = vshrl.u32 %v1385, 7
            %v1387 = vsub.s32 0, %v1386
            %v1388 = vrot.slane %v1370, %v1387
            %v1389 = vlaneseq
            %v1390 = vshrl.u32 %v1389, 7
            %v1391 = vsub.s32 1, %v1390
            %v1392 = vrot.slane %v1370, %v1391
            %v1393 = vlaneseq
            %v1394 = vshrl.u32 %v1393, 7
            %v1395 = vsub.s32 2, %v1394
            %v1396 = vrot.slane %v1370, %v1395
            %v1400 = vmul.f32 %v1381, %v1388
            %v1401 = vmul.f32 %v1382, %v1392
            %v1402 = vmul.f32 %v1383, %v1396
            %v1403 = vadd.f32 %v1400, %v1401
            %vm1404 = vcmask 261120
            %v1405 = vsel %vm1404, %v1402, 0.0
            %v1406 = vadd.f32 %v1403, %v1405
            %1407 = vadd.xlane.f32.xlu0 %v1406
            %v1408 = vpop.xlane.xlu0 %1407
            %v1409 = vadd.f32 %v1377, %v1408
          $region53: #{tpu_custom_call.1} parent=47 // loop_footer
            %s1376 = sadd.s32 1, %s1372
          $region54: #{tpu_custom_call.1} parent=47 // loop_footer_branch
            %1371 = sbr.rel target = $region50
          $region55: #{tpu_custom_call.1} parent=47 // loop_exit
            _
          %v1410 = vrcp.pop 512.0
          %v1411 = vmul.f32 %v1377, %v1410
          loop: start=0, step=1, limit=2
          $region56: #{tpu_custom_call.1} parent=47 // loop_pre_header
            _
          $region57: #{tpu_custom_call.1} parent=47 // loop_header
            %s1413 = sphi 0, %s1417
            %p1414 = scmp.ge.s32.totalorder %s1413, 2
            %v1418 = vphi 0.0, %v1456
          $region58: #{tpu_custom_call.1} parent=47 // loop_header_branch
            %1416 = sbr.rel (%p1414) target = $region62
          $region59: #{tpu_custom_call.1} parent=47 // loop_body
            %s1419 = smul.u32 %s1413, 3
            %s1420 = smul.addr %s1419, 8
            %s1421 = scalar_lea.vmem [#allocation2], %s1420
            %v1422 = vld [vmem:[%s1421] sm:$0xff]
            %v1423 = vld [vmem:[%s1421 + $0x8] sm:$0xff]
            %v1424 = vld [vmem:[%s1421 + $0x10] sm:$0xff]
            %v1425 = vsub.f32 %v1422, %v1411
            %v1426 = vsub.f32 %v1423, %v1411
            %v1427 = vsub.f32 %v1424, %v1411
            %v1429 = vlaneseq
            %v1430 = vshrl.u32 %v1429, 7
            %v1431 = vsub.s32 0, %v1430
            %v1432 = vrot.slane %v1370, %v1431
            %v1433 = vlaneseq
            %v1434 = vshrl.u32 %v1433, 7
            %v1435 = vsub.s32 1, %v1434
            %v1436 = vrot.slane %v1370, %v1435
            %v1437 = vlaneseq
            %v1438 = vshrl.u32 %v1437, 7
            %v1439 = vsub.s32 2, %v1438
            %v1440 = vrot.slane %v1370, %v1439
            %v1444 = vmul.f32 %v1425, %v1432
            %v1445 = vmul.f32 %v1426, %v1436
            %v1446 = vmul.f32 %v1427, %v1440
            %v1447 = vmul.f32 %v1444, %v1444
            %v1448 = vmul.f32 %v1445, %v1445
            %v1449 = vmul.f32 %v1446, %v1446
            %v1450 = vadd.f32 %v1447, %v1448
            %vm1451 = vcmask 261120
            %v1452 = vsel %vm1451, %v1449, 0.0
            %v1453 = vadd.f32 %v1450, %v1452
            %1454 = vadd.xlane.f32.xlu0 %v1453
            %v1455 = vpop.xlane.xlu0 %1454
            %v1456 = vadd.f32 %v1418, %v1455
          $region60: #{tpu_custom_call.1} parent=47 // loop_footer
            %s1417 = sadd.s32 1, %s1413
          $region61: #{tpu_custom_call.1} parent=47 // loop_footer_branch
            %1412 = sbr.rel target = $region57
          $region62: #{tpu_custom_call.1} parent=47 // loop_exit
            _
          %v1457 = vmul.f32 %v1418, %v1410
          %v1458 = vadd.f32 %v1457, 1e-05
          %v1459 = vrsqrt.pop %v1458
          %v1460 = vld [vmem:[%s3] sm:$0xff]
          %v1461 = vmul.f32 %v1460, %v1459
          %vm1462 = vcmask 7168
          %1463 = vst.msk [vmem:[#allocation3] sm:$0xff] %vm1462, %v1461
          %v1464 = vld [vmem:[%s4] sm:$0xff]
          %v1465 = vmul.f32 %v1411, %v1460
          %v1466 = vmul.f32 %v1465, %v1459
          %v1467 = vsub.f32 %v1464, %v1466
          %1468 = vst.msk [vmem:[#allocation4] sm:$0xff] %vm1462, %v1467
        $region48: #{tpu_custom_call.1} parent=39 // pred_fallthru
          _
        // Predicated region
        $region63: #{tpu_custom_call.1} parent=39 // pred_check
          %p1469 = pneg %p1364
        $region64: #{tpu_custom_call.1} parent=39 // pred_check_branch
          %1471 = sbr.rel (%p1469) target = $region66
        $region65: #{tpu_custom_call.1} parent=39 // pred_region
          %s1472 = smul.u32 %s24, 3
          %s1473 = smul.addr %s1472, 8
          %s1474 = scalar_lea.vmem [#allocation2], %s1473
          %v1475 = vld [vmem:[%s1474] sm:$0xff]
          %v1476 = vld [vmem:[%s1474 + $0x8] sm:$0xff]
          %v1477 = vld [vmem:[%s1474 + $0x10] sm:$0xff]
          %v1478 = vld [vmem:[#allocation3] sm:$0xff]
          %1480 = vset.pattern.permute.xlu0 0
          %1481 = vperm.xlu0 %1480, %v1478
          %v1482 = vpop.permute.xlu0 %1481
          %v1484 = vmul.f32 %v1475, %v1482
          %v1485 = vmul.f32 %v1476, %v1482
          %v1486 = vmul.f32 %v1477, %v1482
          %v1487 = vld [vmem:[#allocation4] sm:$0xff]
          %1489 = vset.pattern.permute.xlu0 0
          %1490 = vperm.xlu0 %1489, %v1487
          %v1491 = vpop.permute.xlu0 %1490
          %v1493 = vadd.f32 %v1484, %v1491
          %v1494 = vadd.f32 %v1485, %v1491
          %v1495 = vadd.f32 %v1486, %v1491
          %v1496 = vmax.f32 %v1493, 0.0
          %v1497 = vmax.f32 %v1494, 0.0
          %v1498 = vmax.f32 %v1495, 0.0
          %1499 = vst [vmem:[%s246] sm:$0xff] %v1496
          %1500 = vst [vmem:[%s246 + $0x8] sm:$0xff] %v1497
          %vm1501 = vcmask 261120
          %1502 = vst.msk [vmem:[%s246 + $0x10] sm:$0xff] %vm1501, %v1498
        $region66: #{tpu_custom_call.1} parent=39 // pred_fallthru
          _
        %s1503 = sand.u32 %s157, 1
        %s1504 = scalar_lea.sflag [#allocation6], %s1503
        %s1505 = sand.u32 %s157, 1
        %s1506 = smul.addr %s1505, 24
        %s1507 = scalar_lea.vmem [#allocation5], %s1506
        // Predicated region
        $region67: #{tpu_custom_call.1} parent=39 // pred_check
          %p1508 = pneg %p167
        $region68: #{tpu_custom_call.1} parent=39 // pred_check_branch
          %1510 = sbr.rel (%p1508) target = $region70
        $region69: #{tpu_custom_call.1} parent=39 // pred_region
          %s1511 = smul.u32 %s23, %s24
          %s1513 = ssub.s32 384, 384
          %1514 = vsyncadd %s1504, %s1513
          %s1515 = smul.addr %s1511, 3
          %s1516 = smul.addr %s1515, 128
          %s1517 = scalar_lea.hbm %s5, %s1516
          %s1519 = sshll.u32 %s1507, 4
          %s1520 = int_to_ptr.vmem [resolvable:$true] %s1519
          %1522 = dma.vmem_to_hbm [thread:$0]  %s1520, 384, %s1517, %s1504
        $region70: #{tpu_custom_call.1} parent=39 // pred_fallthru
          _
      $region40: #{tpu_custom_call.1} parent=5 // pred_fallthru
        _
      %p1523 = scmp.le.s32.totalorder 2, %s14
      // Predicated region
      $region71: #{tpu_custom_call.1} parent=5 // pred_check
        %p1524 = pneg %p1523
      $region72: #{tpu_custom_call.1} parent=5 // pred_check_branch
        %1526 = sbr.rel (%p1524) target = $region74
      $region73: #{tpu_custom_call.1} parent=5 // pred_region
        %s1527 = ssub.s32 %s14, 2
        // Predicated region
        $region75: #{tpu_custom_call.1} parent=73 // pred_check
          %p1528 = pneg %p173
        $region76: #{tpu_custom_call.1} parent=73 // pred_check_branch
          %1530 = sbr.rel (%p1528) target = $region78
        $region77: #{tpu_custom_call.1} parent=73 // pred_region
          %s1531 = sand.u32 %s158, 1
          %s1532 = scalar_lea.sflag [#allocation6], %s1531
          %s1533 = sand.u32 %s158, 1
          %s1534 = smul.addr %s1533, 24
          %s1535 = scalar_lea.vmem [#allocation5], %s1534
          %1536 = dma.done %s1532, 384
        $region78: #{tpu_custom_call.1} parent=73 // pred_fallthru
          _
      $region74: #{tpu_custom_call.1} parent=5 // pred_fallthru
        _
    $region6: #{tpu_custom_call.1} parent=1 // loop_footer
      %s18 = sadd.s32 1, %s14
    $region7: #{tpu_custom_call.1} parent=1 // loop_footer_branch
      %13 = sbr.rel target = $region3
    $region8: #{tpu_custom_call.1} parent=1 // loop_exit
      _
    %1537 = vsyncpa [#allocation6], 1
    %s1538 = scalar_lea.sflag [#allocation6], 1
    %1539 = vsyncpa %s1538, 1

</llo_original>
